<compile_context>
chip_gen: v7x
topology: tpu7x:2x2x1
jax: 0.10.0
libtpu: 0.0.40
codegen_flags: <defaults>
</compile_context>

<pallas_src>
import jax
import jax.numpy as jnp
import numpy as np
from jax import lax
from jax.experimental import pallas as pl
from jax.experimental.pallas import tpu as pltpu

# --- module hyperparameters --------------------------------------------------
N_JOINTS = 4
N_DIMS   = 3
HIDDEN   = 32                     # H; 4*H = 128 = one lane-full gate block
LATENT   = 16
B        = 2
T        = 8
F        = N_JOINTS * N_DIMS      # 12
EPS      = 1e-5                   # PyTorch LayerNorm default eps
INV_SQRT2 = 0.7071067811865476


def _layernorm(x, gamma, beta):
    mean = jnp.mean(x, axis=-1, keepdims=True)
    var = jnp.mean((x - mean) ** 2, axis=-1, keepdims=True)     # biased, like PyTorch
    return (x - mean) * lax.rsqrt(var + EPS) * gamma + beta


def _erf(x):
    # Abramowitz & Stegun 7.1.26 (|error| <= 1.5e-7): exp + polys only, so it
    # lowers on Mosaic without relying on an erf primitive.
    a1, a2, a3, a4, a5 = 0.254829592, -0.284496736, 1.421413741, -1.453152027, 1.061405429
    pc = 0.3275911
    sign = jnp.where(x >= 0.0, 1.0, -1.0)
    ax = jnp.abs(x)
    t = 1.0 / (1.0 + pc * ax)
    poly = ((((a5 * t + a4) * t + a3) * t + a2) * t + a1) * t
    return sign * (1.0 - poly * jnp.exp(-ax * ax))


def encoder_kernel(x_ref, w_ref, vec_ref, mu_ref, logvar_ref):
    H, L = HIDDEN, LATENT

    # ---- packed bf16 weights (pre-transposed, lane-dense) --------------------
    # block-diagonal skewed-recurrence RHS (rows -> out lanes):
    #   rows   0:32  wih0^T -> lanes   0:128     rows  64:96  wih1^T -> lanes 128:256
    #   rows  32:64  whh0^T -> lanes   0:128     rows 96:128  whh1^T -> lanes 128:256
    w_bd     = w_ref[0:128, :]                  # (128, 256)
    w_l1_t   = w_ref[64:128, 128:256]           # (64, 128)  [wih1^T ; whh1^T]
    w_in_t   = w_ref[128:128 + F, 0:H]          # (12, 32)
    w_mlp_t  = w_ref[128:160, H:2 * H]          # (32, 32)
    w_head_t = w_ref[128:160, 2 * H:3 * H]      # (32, 32)   [w_mu^T | w_lv^T]

    # ---- f32 vectors ----------------------------------------------------------
    b01    = vec_ref[0:1, :]                    # (1, 256)  [bih0+bhh0 | bih1+bhh1]
    b1     = vec_ref[0:1, 4 * H:8 * H]          # (1, 128)
    g_pre  = vec_ref[1:2, 0:4 * H]              # 0.5 on i/f/o lanes, 1.0 on g lanes
    g_off  = vec_ref[2:3, 0:4 * H]              # 0.5 on i/f/o lanes, 0.0 on g lanes
    b_in   = vec_ref[3:4, 0:H]
    ln1_g  = vec_ref[4:5, 0:H]
    ln1_b  = vec_ref[5:6, 0:H]
    w_att  = vec_ref[6:7, 0:H]
    b_mlp  = vec_ref[7:8, 0:H]
    ln2_g  = vec_ref[8:9, 0:H]
    ln2_b  = vec_ref[9:10, 0:H]
    b_head = vec_ref[10:11, 0:2 * L]            # (1, 32) = [b_mu | b_logvar]

    def lstm_gates(g):
        # one tanh per 128-lane gate block: sigmoid(x) = 0.5*tanh(0.5*x) + 0.5
        a = g_pre * jnp.tanh(g * g_pre) + g_off
        return a[:, 0:H], a[:, H:2 * H], a[:, 2 * H:3 * H], a[:, 3 * H:4 * H]

    def att_update(h, m_run, den, ctx):
        # online softmax-weighted sum over time (the Linear bias b_att is a
        # constant shift along the softmax axis and cancels exactly).
        sc = jnp.sum(h * w_att, axis=-1, keepdims=True)          # (B, 1)
        m_new = jnp.maximum(m_run, sc)
        scale = jnp.exp(m_run - m_new)
        p = jnp.exp(sc - m_new)
        return m_new, scale * den + p, scale * ctx + p * h

    # ---- input projection: Linear + LayerNorm (Dropout = identity) -----------
    x = x_ref[...]                                               # (B*T, F), rows = b*T + t
    proj = jnp.dot(x.astype(jnp.bfloat16), w_in_t,
                   preferred_element_type=jnp.float32) + b_in
    proj = _layernorm(proj, ln1_g, ln1_b)                        # (B*T, H) f32

    # ---- skewed 2-layer LSTM + online temporal attention, fully unrolled -----
    zero_bh = jnp.zeros((B, H), jnp.float32)
    h0, c0, h1, c1 = zero_bh, zero_bh, zero_bh, zero_bh
    m_run = jnp.full((B, 1), -1e30, jnp.float32)
    den = jnp.zeros((B, 1), jnp.float32)
    ctx = jnp.zeros((B, H), jnp.float32)

    for s in range(T):                          # static, fully unrolled
        # entering step s:  h0 = h0(s-1), c0 = c0(s-1), h1 = h1(s-2), c1 = c1(s-2)
        proj_s = jnp.concatenate(
            [proj[bb * T + s: bb * T + s + 1, :] for bb in range(B)], axis=0)  # (B, H)
        lhs = jnp.concatenate([proj_s, h0, h0, h1], axis=1)       # (B, 4H)
        gates = jnp.dot(lhs.astype(jnp.bfloat16), w_bd,
                        preferred_element_type=jnp.float32) + b01  # (B, 8H)
        if s >= 1:                              # layer-1 update for time step s-1
            i1, f1, g1, o1 = lstm_gates(gates[:, 4 * H:8 * H])
            c1 = f1 * c1 + i1 * g1
            h1 = o1 * jnp.tanh(c1)
            m_run, den, ctx = att_update(h1, m_run, den, ctx)
        i0, f0, g0, o0 = lstm_gates(gates[:, 0:4 * H])            # layer-0, step s
        c0 = f0 * c0 + i0 * g0
        h0 = o0 * jnp.tanh(c0)

    # trailing layer-1 step for time step T-1  (inter-layer dropout = identity)
    gl = jnp.dot(jnp.concatenate([h0, h1], axis=1).astype(jnp.bfloat16), w_l1_t,
                 preferred_element_type=jnp.float32) + b1
    i1, f1, g1, o1 = lstm_gates(gl)
    c1 = f1 * c1 + i1 * g1
    h1 = o1 * jnp.tanh(c1)
    m_run, den, ctx = att_update(h1, m_run, den, ctx)

    context = ctx / den                          # softmax-weighted sum over time
    combined = context + h1                      # hidden[-1] == h1(T-1)

    # ---- MLP: Linear + LayerNorm + exact (erf) GELU ---------------------------
    hm = jnp.dot(combined.astype(jnp.bfloat16), w_mlp_t,
                 preferred_element_type=jnp.float32) + b_mlp
    hm = _layernorm(hm, ln2_g, ln2_b)
    hm = 0.5 * hm * (1.0 + _erf(hm * INV_SQRT2))

    # ---- fused mu / logvar heads: one matmul, two tiny stores -----------------
    head = jnp.dot(hm.astype(jnp.bfloat16), w_head_t,
                   preferred_element_type=jnp.float32) + b_head   # (B, 2L)
    mu_ref[...] = head[:, 0:L]
    logvar_ref[...] = head[:, L:2 * L]


def init_params(key):
    """Deterministic synthetic parameters with the module's (PyTorch) shapes."""
    ks = iter(jax.random.split(key, 24))

    def u(shape):
        return jax.random.uniform(next(ks), shape, jnp.float32, -0.1, 0.1)

    H, L = HIDDEN, LATENT
    return dict(
        w_in=u((H, F)), b_in=u((H,)),
        ln1_g=jnp.ones((H,), jnp.float32), ln1_b=jnp.zeros((H,), jnp.float32),
        wih0=u((4 * H, H)), whh0=u((4 * H, H)), bih0=u((4 * H,)), bhh0=u((4 * H,)),
        wih1=u((4 * H, H)), whh1=u((4 * H, H)), bih1=u((4 * H,)), bhh1=u((4 * H,)),
        w_att=u((1, H)), b_att=u((1,)),
        w_mlp=u((H, H)), b_mlp=u((H,)),
        ln2_g=jnp.ones((H,), jnp.float32), ln2_b=jnp.zeros((H,), jnp.float32),
        w_mu=u((L, H)), b_mu=u((L,)),
        w_lv=u((L, H)), b_lv=u((L,)),
    )


def pack_params(p):
    """Pack PyTorch-layout params into one bf16 weight slab + one f32 vector slab."""
    H, L = HIDDEN, LATENT

    # (160, 256) bf16: block-diagonal skewed-recurrence RHS + small matrices.
    W = jnp.zeros((160, 256), jnp.float32)
    W = W.at[0:32, 0:128].set(p["wih0"].T)
    W = W.at[32:64, 0:128].set(p["whh0"].T)
    W = W.at[64:96, 128:256].set(p["wih1"].T)
    W = W.at[96:128, 128:256].set(p["whh1"].T)
    W = W.at[128:128 + F, 0:H].set(p["w_in"].T)
    W = W.at[128:160, H:2 * H].set(p["w_mlp"].T)
    W = W.at[128:160, 2 * H:3 * H].set(jnp.concatenate([p["w_mu"].T, p["w_lv"].T], axis=1))
    W = W.astype(jnp.bfloat16)

    # (16, 256) f32: fused biases, gate-fusion constants, LN params, attention, heads.
    vec = jnp.zeros((16, 256), jnp.float32)
    vec = vec.at[0, 0:128].set(p["bih0"] + p["bhh0"])
    vec = vec.at[0, 128:256].set(p["bih1"] + p["bhh1"])
    pre = jnp.concatenate([jnp.full((H,), 0.5), jnp.full((H,), 0.5),
                           jnp.full((H,), 1.0), jnp.full((H,), 0.5)])
    off = jnp.concatenate([jnp.full((H,), 0.5), jnp.full((H,), 0.5),
                           jnp.full((H,), 0.0), jnp.full((H,), 0.5)])
    vec = vec.at[1, 0:128].set(pre)
    vec = vec.at[2, 0:128].set(off)
    vec = vec.at[3, 0:H].set(p["b_in"])
    vec = vec.at[4, 0:H].set(p["ln1_g"])
    vec = vec.at[5, 0:H].set(p["ln1_b"])
    vec = vec.at[6, 0:H].set(p["w_att"].reshape(H))
    vec = vec.at[7, 0:H].set(p["b_mlp"])
    vec = vec.at[8, 0:H].set(p["ln2_g"])
    vec = vec.at[9, 0:H].set(p["ln2_b"])
    vec = vec.at[10, 0:2 * L].set(jnp.concatenate([p["b_mu"], p["b_lv"]]))
    # p["b_att"] intentionally unused: it cancels in the softmax over time.
    return W, vec


def lightweight_encoder_lstm(x, packed):
    """x: (B, T, n_joints, n_dims) — same layout as the PyTorch module."""
    w, vec = packed
    b, t, j, d = x.shape
    assert (b, t, j * d) == (B, T, F)
    # contiguous reshape (free under jit); all other data movement is in-kernel
    x_flat = x.reshape(b * t, j * d).astype(jnp.float32)

    vmem = pl.BlockSpec(memory_space=pltpu.MemorySpace.VMEM)
    mu, logvar = pl.pallas_call(
        encoder_kernel,
        out_shape=(jax.ShapeDtypeStruct((b, LATENT), jnp.float32),
                   jax.ShapeDtypeStruct((b, LATENT), jnp.float32)),
        in_specs=[vmem, vmem, vmem],
        out_specs=(vmem, vmem),
    )(x_flat, w, vec)
    return mu, logvar


def reference_forward(x, p):
    """Pure-JAX reference of the PyTorch module (inference), using the same
    bf16 matmul-operand / f32-accumulate convention as the kernel."""
    H = HIDDEN

    def mm(a, w_t):
        return jnp.dot(a.astype(jnp.bfloat16), w_t.astype(jnp.bfloat16),
                       preferred_element_type=jnp.float32)

    def ln(v, g, b):
        m = jnp.mean(v, -1, keepdims=True)
        var = jnp.mean((v - m) ** 2, -1, keepdims=True)
        return (v - m) * lax.rsqrt(var + EPS) * g + b

    bsz, tn = x.shape[0], x.shape[1]
    xf = x.reshape(bsz, tn, -1).astype(jnp.float32)
    proj = ln(mm(xf.reshape(bsz * tn, -1), p["w_in"].T) + p["b_in"],
              p["ln1_g"], p["ln1_b"]).reshape(bsz, tn, H)

    def cell(xt, h, c, wih, whh, bih, bhh):
        g = mm(xt, wih.T) + mm(h, whh.T) + bih + bhh
        i = jax.nn.sigmoid(g[:, 0:H]); f = jax.nn.sigmoid(g[:, H:2 * H])
        gg = jnp.tanh(g[:, 2 * H:3 * H]); o = jax.nn.sigmoid(g[:, 3 * H:4 * H])
        c = f * c + i * gg
        return o * jnp.tanh(c), c

    h0 = c0 = h1 = c1 = jnp.zeros((bsz, H), jnp.float32)
    outs = []
    for t in range(tn):
        h0, c0 = cell(proj[:, t], h0, c0, p["wih0"], p["whh0"], p["bih0"], p["bhh0"])
        h1, c1 = cell(h0, h1, c1, p["wih1"], p["whh1"], p["bih1"], p["bhh1"])
        outs.append(h1)
    lstm_out = jnp.stack(outs, axis=1)                            # (B, T, H)

    scores = jnp.einsum("bth,h->bt", lstm_out, p["w_att"][0]) + p["b_att"][0]
    attw = jax.nn.softmax(scores, axis=1)[..., None]              # (B, T, 1)
    context = jnp.sum(lstm_out * attw, axis=1)
    combined = context + h1

    hm = ln(mm(combined, p["w_mlp"].T) + p["b_mlp"], p["ln2_g"], p["ln2_b"])
    hm = 0.5 * hm * (1.0 + jax.scipy.special.erf(hm * INV_SQRT2))
    mu = mm(hm, p["w_mu"].T) + p["b_mu"]
    lv = mm(hm, p["w_lv"].T) + p["b_lv"]
    return mu, lv


if __name__ == "__main__":
    key = jax.random.PRNGKey(0)
    kx, kp = jax.random.split(key)
    x = jax.random.normal(kx, (B, T, N_JOINTS, N_DIMS), dtype=jnp.float32)
    params = init_params(kp)
    packed = pack_params(params)

    mu, logvar = jax.jit(lightweight_encoder_lstm)(x, packed)
    jax.block_until_ready((mu, logvar))
    assert mu.shape == (B, LATENT) and logvar.shape == (B, LATENT)
    assert bool(jnp.all(jnp.isfinite(mu))) and bool(jnp.all(jnp.isfinite(logvar)))

    mu_ref, logvar_ref = reference_forward(x, params)
    np.testing.assert_allclose(np.asarray(mu), np.asarray(mu_ref), rtol=1e-2, atol=1e-2)
    np.testing.assert_allclose(np.asarray(logvar), np.asarray(logvar_ref), rtol=1e-2, atol=1e-2)
    print("KERNEL_OK")
</pallas_src>

<mosaic_0001>
module attributes {stable_mosaic.version = 11 : i64} {
  func.func @encoder_kernel(%arg0: memref<16x12xf32, #tpu.memory_space<vmem>>, %arg1: memref<160x256xbf16, #tpu.memory_space<vmem>>, %arg2: memref<16x256xf32, #tpu.memory_space<vmem>>, %arg3: memref<2x16xf32, #tpu.memory_space<vmem>>, %arg4: memref<2x16xf32, #tpu.memory_space<vmem>>) attributes {dimension_semantics = [], scalar_prefetch = 0 : i64, scratch_operands = 0 : i64, tpu.core_type = #tpu.core_type<tc>} {
    %c0 = arith.constant 0 : index
    %c0_0 = arith.constant 0 : index
    %0 = vector.load %arg1[%c0, %c0_0] : memref<160x256xbf16, #tpu.memory_space<vmem>>, vector<128x256xbf16>
    %c64 = arith.constant 64 : index
    %c128 = arith.constant 128 : index
    %1 = vector.load %arg1[%c64, %c128] : memref<160x256xbf16, #tpu.memory_space<vmem>>, vector<64x128xbf16>
    %c128_1 = arith.constant 128 : index
    %c0_2 = arith.constant 0 : index
    %2 = vector.load %arg1[%c128_1, %c0_2] : memref<160x256xbf16, #tpu.memory_space<vmem>>, vector<12x32xbf16>
    %c128_3 = arith.constant 128 : index
    %c32 = arith.constant 32 : index
    %3 = vector.load %arg1[%c128_3, %c32] : memref<160x256xbf16, #tpu.memory_space<vmem>>, vector<32x32xbf16>
    %c128_4 = arith.constant 128 : index
    %c64_5 = arith.constant 64 : index
    %4 = vector.load %arg1[%c128_4, %c64_5] : memref<160x256xbf16, #tpu.memory_space<vmem>>, vector<32x32xbf16>
    %c0_6 = arith.constant 0 : index
    %c0_7 = arith.constant 0 : index
    %5 = vector.load %arg2[%c0_6, %c0_7] : memref<16x256xf32, #tpu.memory_space<vmem>>, vector<1x256xf32>
    %c0_8 = arith.constant 0 : index
    %c128_9 = arith.constant 128 : index
    %6 = vector.load %arg2[%c0_8, %c128_9] : memref<16x256xf32, #tpu.memory_space<vmem>>, vector<1x128xf32>
    %c1 = arith.constant 1 : index
    %c0_10 = arith.constant 0 : index
    %7 = vector.load %arg2[%c1, %c0_10] : memref<16x256xf32, #tpu.memory_space<vmem>>, vector<1x128xf32>
    %c2 = arith.constant 2 : index
    %c0_11 = arith.constant 0 : index
    %8 = vector.load %arg2[%c2, %c0_11] : memref<16x256xf32, #tpu.memory_space<vmem>>, vector<1x128xf32>
    %c3 = arith.constant 3 : index
    %c0_12 = arith.constant 0 : index
    %9 = vector.load %arg2[%c3, %c0_12] : memref<16x256xf32, #tpu.memory_space<vmem>>, vector<1x32xf32>
    %c4 = arith.constant 4 : index
    %c0_13 = arith.constant 0 : index
    %10 = vector.load %arg2[%c4, %c0_13] : memref<16x256xf32, #tpu.memory_space<vmem>>, vector<1x32xf32>
    %c5 = arith.constant 5 : index
    %c0_14 = arith.constant 0 : index
    %11 = vector.load %arg2[%c5, %c0_14] : memref<16x256xf32, #tpu.memory_space<vmem>>, vector<1x32xf32>
    %c6 = arith.constant 6 : index
    %c0_15 = arith.constant 0 : index
    %12 = vector.load %arg2[%c6, %c0_15] : memref<16x256xf32, #tpu.memory_space<vmem>>, vector<1x32xf32>
    %c7 = arith.constant 7 : index
    %c0_16 = arith.constant 0 : index
    %13 = vector.load %arg2[%c7, %c0_16] : memref<16x256xf32, #tpu.memory_space<vmem>>, vector<1x32xf32>
    %c8 = arith.constant 8 : index
    %c0_17 = arith.constant 0 : index
    %14 = vector.load %arg2[%c8, %c0_17] : memref<16x256xf32, #tpu.memory_space<vmem>>, vector<1x32xf32>
    %c9 = arith.constant 9 : index
    %c0_18 = arith.constant 0 : index
    %15 = vector.load %arg2[%c9, %c0_18] : memref<16x256xf32, #tpu.memory_space<vmem>>, vector<1x32xf32>
    %c10 = arith.constant 10 : index
    %c0_19 = arith.constant 0 : index
    %16 = vector.load %arg2[%c10, %c0_19] : memref<16x256xf32, #tpu.memory_space<vmem>>, vector<1x32xf32>
    %c0_20 = arith.constant 0 : index
    %c0_21 = arith.constant 0 : index
    %17 = vector.load %arg0[%c0_20, %c0_21] : memref<16x12xf32, #tpu.memory_space<vmem>>, vector<16x12xf32>
    %18 = arith.truncf %17 : vector<16x12xf32> to vector<16x12xbf16>
    %cst = arith.constant dense<0.000000e+00> : vector<16x32xf32>
    %19 = tpu.matmul %18, %2, %cst {dimension_numbers = #tpu.dot_dimension_numbers<[1], [0], [0], [1], [0, 0, 1, 1], [], []>} : vector<16x12xbf16>, vector<12x32xbf16>, vector<16x32xf32> -> vector<16x32xf32>
    %20 = vector.broadcast %9 : vector<1x32xf32> to vector<16x32xf32>
    %21 = arith.addf %19, %20 : vector<16x32xf32>
    %cst_22 = arith.constant dense<0.000000e+00> : vector<16xf32>
    %22 = vector.multi_reduction <add>, %21, %cst_22 [1] : vector<16x32xf32> to vector<16xf32>
    %23 = vector.shape_cast %22 : vector<16xf32> to vector<16x1xf32>
    %cst_23 = arith.constant 3.200000e+01 : f32
    %24 = vector.broadcast %cst_23 : f32 to vector<16x1xf32>
    %25 = arith.divf %23, %24 : vector<16x1xf32>
    %26 = vector.broadcast %25 : vector<16x1xf32> to vector<16x32xf32>
    %27 = arith.subf %21, %26 : vector<16x32xf32>
    %28 = arith.mulf %27, %27 : vector<16x32xf32>
    %cst_24 = arith.constant dense<0.000000e+00> : vector<16xf32>
    %29 = vector.multi_reduction <add>, %28, %cst_24 [1] : vector<16x32xf32> to vector<16xf32>
    %30 = vector.shape_cast %29 : vector<16xf32> to vector<16x1xf32>
    %cst_25 = arith.constant 3.200000e+01 : f32
    %31 = vector.broadcast %cst_25 : f32 to vector<16x1xf32>
    %32 = arith.divf %30, %31 : vector<16x1xf32>
    %33 = vector.broadcast %25 : vector<16x1xf32> to vector<16x32xf32>
    %34 = arith.subf %21, %33 : vector<16x32xf32>
    %cst_26 = arith.constant 9.99999974E-6 : f32
    %35 = vector.broadcast %cst_26 : f32 to vector<16x1xf32>
    %36 = arith.addf %32, %35 : vector<16x1xf32>
    %37 = math.rsqrt %36 : vector<16x1xf32>
    %38 = vector.broadcast %37 : vector<16x1xf32> to vector<16x32xf32>
    %39 = arith.mulf %34, %38 : vector<16x32xf32>
    %40 = vector.broadcast %10 : vector<1x32xf32> to vector<16x32xf32>
    %41 = arith.mulf %39, %40 : vector<16x32xf32>
    %42 = vector.broadcast %11 : vector<1x32xf32> to vector<16x32xf32>
    %43 = arith.addf %41, %42 : vector<16x32xf32>
    %cst_27 = arith.constant 0.000000e+00 : f32
    %44 = vector.broadcast %cst_27 : f32 to vector<2x32xf32>
    %cst_28 = arith.constant -1.000000e+30 : f32
    %45 = vector.broadcast %cst_28 : f32 to vector<2x1xf32>
    %cst_29 = arith.constant 0.000000e+00 : f32
    %46 = vector.broadcast %cst_29 : f32 to vector<2x1xf32>
    %cst_30 = arith.constant 0.000000e+00 : f32
    %47 = vector.broadcast %cst_30 : f32 to vector<2x32xf32>
    %48 = vector.extract_strided_slice %43 {offsets = [0, 0], sizes = [1, 32], strides = [1, 1]} : vector<16x32xf32> to vector<1x32xf32>
    %49 = vector.extract_strided_slice %43 {offsets = [8, 0], sizes = [1, 32], strides = [1, 1]} : vector<16x32xf32> to vector<1x32xf32>
    %50 = tpu.concatenate %48, %49 in 0 : vector<1x32xf32>, vector<1x32xf32> -> vector<2x32xf32>
    %51 = tpu.concatenate %50, %44, %44, %44 in 1 : vector<2x32xf32>, vector<2x32xf32>, vector<2x32xf32>, vector<2x32xf32> -> vector<2x128xf32>
    %52 = arith.truncf %51 : vector<2x128xf32> to vector<2x128xbf16>
    %cst_31 = arith.constant dense<0.000000e+00> : vector<2x256xf32>
    %53 = tpu.matmul %52, %0, %cst_31 {dimension_numbers = #tpu.dot_dimension_numbers<[1], [0], [0], [1], [0, 0, 1, 1], [], []>} : vector<2x128xbf16>, vector<128x256xbf16>, vector<2x256xf32> -> vector<2x256xf32>
    %54 = vector.broadcast %5 : vector<1x256xf32> to vector<2x256xf32>
    %55 = arith.addf %53, %54 : vector<2x256xf32>
    %56 = vector.extract_strided_slice %55 {offsets = [0, 0], sizes = [2, 128], strides = [1, 1]} : vector<2x256xf32> to vector<2x128xf32>
    %57 = vector.broadcast %7 : vector<1x128xf32> to vector<2x128xf32>
    %58 = arith.mulf %56, %57 : vector<2x128xf32>
    %59 = math.tanh %58 : vector<2x128xf32>
    %60 = vector.broadcast %7 : vector<1x128xf32> to vector<2x128xf32>
    %61 = arith.mulf %60, %59 : vector<2x128xf32>
    %62 = vector.broadcast %8 : vector<1x128xf32> to vector<2x128xf32>
    %63 = arith.addf %61, %62 : vector<2x128xf32>
    %64 = vector.extract_strided_slice %63 {offsets = [0, 0], sizes = [2, 32], strides = [1, 1]} : vector<2x128xf32> to vector<2x32xf32>
    %65 = vector.extract_strided_slice %63 {offsets = [0, 32], sizes = [2, 32], strides = [1, 1]} : vector<2x128xf32> to vector<2x32xf32>
    %66 = vector.extract_strided_slice %63 {offsets = [0, 64], sizes = [2, 32], strides = [1, 1]} : vector<2x128xf32> to vector<2x32xf32>
    %67 = vector.extract_strided_slice %63 {offsets = [0, 96], sizes = [2, 32], strides = [1, 1]} : vector<2x128xf32> to vector<2x32xf32>
    %68 = arith.mulf %65, %44 : vector<2x32xf32>
    %69 = arith.mulf %64, %66 : vector<2x32xf32>
    %70 = arith.addf %68, %69 : vector<2x32xf32>
    %71 = math.tanh %70 : vector<2x32xf32>
    %72 = arith.mulf %67, %71 : vector<2x32xf32>
    %73 = vector.extract_strided_slice %43 {offsets = [1, 0], sizes = [1, 32], strides = [1, 1]} : vector<16x32xf32> to vector<1x32xf32>
    %74 = vector.extract_strided_slice %43 {offsets = [9, 0], sizes = [1, 32], strides = [1, 1]} : vector<16x32xf32> to vector<1x32xf32>
    %75 = tpu.concatenate %73, %74 in 0 : vector<1x32xf32>, vector<1x32xf32> -> vector<2x32xf32>
    %76 = tpu.concatenate %75, %72, %72, %44 in 1 : vector<2x32xf32>, vector<2x32xf32>, vector<2x32xf32>, vector<2x32xf32> -> vector<2x128xf32>
    %77 = arith.truncf %76 : vector<2x128xf32> to vector<2x128xbf16>
    %cst_32 = arith.constant dense<0.000000e+00> : vector<2x256xf32>
    %78 = tpu.matmul %77, %0, %cst_32 {dimension_numbers = #tpu.dot_dimension_numbers<[1], [0], [0], [1], [0, 0, 1, 1], [], []>} : vector<2x128xbf16>, vector<128x256xbf16>, vector<2x256xf32> -> vector<2x256xf32>
    %79 = vector.broadcast %5 : vector<1x256xf32> to vector<2x256xf32>
    %80 = arith.addf %78, %79 : vector<2x256xf32>
    %81 = vector.extract_strided_slice %80 {offsets = [0, 128], sizes = [2, 128], strides = [1, 1]} : vector<2x256xf32> to vector<2x128xf32>
    %82 = vector.broadcast %7 : vector<1x128xf32> to vector<2x128xf32>
    %83 = arith.mulf %81, %82 : vector<2x128xf32>
    %84 = math.tanh %83 : vector<2x128xf32>
    %85 = vector.broadcast %7 : vector<1x128xf32> to vector<2x128xf32>
    %86 = arith.mulf %85, %84 : vector<2x128xf32>
    %87 = vector.broadcast %8 : vector<1x128xf32> to vector<2x128xf32>
    %88 = arith.addf %86, %87 : vector<2x128xf32>
    %89 = vector.extract_strided_slice %88 {offsets = [0, 0], sizes = [2, 32], strides = [1, 1]} : vector<2x128xf32> to vector<2x32xf32>
    %90 = vector.extract_strided_slice %88 {offsets = [0, 32], sizes = [2, 32], strides = [1, 1]} : vector<2x128xf32> to vector<2x32xf32>
    %91 = vector.extract_strided_slice %88 {offsets = [0, 64], sizes = [2, 32], strides = [1, 1]} : vector<2x128xf32> to vector<2x32xf32>
    %92 = vector.extract_strided_slice %88 {offsets = [0, 96], sizes = [2, 32], strides = [1, 1]} : vector<2x128xf32> to vector<2x32xf32>
    %93 = arith.mulf %90, %44 : vector<2x32xf32>
    %94 = arith.mulf %89, %91 : vector<2x32xf32>
    %95 = arith.addf %93, %94 : vector<2x32xf32>
    %96 = math.tanh %95 : vector<2x32xf32>
    %97 = arith.mulf %92, %96 : vector<2x32xf32>
    %98 = vector.broadcast %12 : vector<1x32xf32> to vector<2x32xf32>
    %99 = arith.mulf %97, %98 : vector<2x32xf32>
    %cst_33 = arith.constant dense<0.000000e+00> : vector<2xf32>
    %100 = vector.multi_reduction <add>, %99, %cst_33 [1] : vector<2x32xf32> to vector<2xf32>
    %101 = vector.shape_cast %100 : vector<2xf32> to vector<2x1xf32>
    %102 = arith.maximumf %45, %101 : vector<2x1xf32>
    %103 = arith.subf %45, %102 : vector<2x1xf32>
    %104 = math.exp %103 : vector<2x1xf32>
    %105 = arith.subf %101, %102 : vector<2x1xf32>
    %106 = math.exp %105 : vector<2x1xf32>
    %107 = arith.mulf %104, %46 : vector<2x1xf32>
    %108 = arith.addf %107, %106 : vector<2x1xf32>
    %109 = vector.broadcast %104 : vector<2x1xf32> to vector<2x32xf32>
    %110 = arith.mulf %109, %47 : vector<2x32xf32>
    %111 = vector.broadcast %106 : vector<2x1xf32> to vector<2x32xf32>
    %112 = arith.mulf %111, %97 : vector<2x32xf32>
    %113 = arith.addf %110, %112 : vector<2x32xf32>
    %114 = vector.extract_strided_slice %80 {offsets = [0, 0], sizes = [2, 128], strides = [1, 1]} : vector<2x256xf32> to vector<2x128xf32>
    %115 = vector.broadcast %7 : vector<1x128xf32> to vector<2x128xf32>
    %116 = arith.mulf %114, %115 : vector<2x128xf32>
    %117 = math.tanh %116 : vector<2x128xf32>
    %118 = vector.broadcast %7 : vector<1x128xf32> to vector<2x128xf32>
    %119 = arith.mulf %118, %117 : vector<2x128xf32>
    %120 = vector.broadcast %8 : vector<1x128xf32> to vector<2x128xf32>
    %121 = arith.addf %119, %120 : vector<2x128xf32>
    %122 = vector.extract_strided_slice %121 {offsets = [0, 0], sizes = [2, 32], strides = [1, 1]} : vector<2x128xf32> to vector<2x32xf32>
    %123 = vector.extract_strided_slice %121 {offsets = [0, 32], sizes = [2, 32], strides = [1, 1]} : vector<2x128xf32> to vector<2x32xf32>
    %124 = vector.extract_strided_slice %121 {offsets = [0, 64], sizes = [2, 32], strides = [1, 1]} : vector<2x128xf32> to vector<2x32xf32>
    %125 = vector.extract_strided_slice %121 {offsets = [0, 96], sizes = [2, 32], strides = [1, 1]} : vector<2x128xf32> to vector<2x32xf32>
    %126 = arith.mulf %123, %70 : vector<2x32xf32>
    %127 = arith.mulf %122, %124 : vector<2x32xf32>
    %128 = arith.addf %126, %127 : vector<2x32xf32>
    %129 = math.tanh %128 : vector<2x32xf32>
    %130 = arith.mulf %125, %129 : vector<2x32xf32>
    %131 = vector.extract_strided_slice %43 {offsets = [2, 0], sizes = [1, 32], strides = [1, 1]} : vector<16x32xf32> to vector<1x32xf32>
    %132 = vector.extract_strided_slice %43 {offsets = [10, 0], sizes = [1, 32], strides = [1, 1]} : vector<16x32xf32> to vector<1x32xf32>
    %133 = tpu.concatenate %131, %132 in 0 : vector<1x32xf32>, vector<1x32xf32> -> vector<2x32xf32>
    %134 = tpu.concatenate %133, %130, %130, %97 in 1 : vector<2x32xf32>, vector<2x32xf32>, vector<2x32xf32>, vector<2x32xf32> -> vector<2x128xf32>
    %135 = arith.truncf %134 : vector<2x128xf32> to vector<2x128xbf16>
    %cst_34 = arith.constant dense<0.000000e+00> : vector<2x256xf32>
    %136 = tpu.matmul %135, %0, %cst_34 {dimension_numbers = #tpu.dot_dimension_numbers<[1], [0], [0], [1], [0, 0, 1, 1], [], []>} : vector<2x128xbf16>, vector<128x256xbf16>, vector<2x256xf32> -> vector<2x256xf32>
    %137 = vector.broadcast %5 : vector<1x256xf32> to vector<2x256xf32>
    %138 = arith.addf %136, %137 : vector<2x256xf32>
    %139 = vector.extract_strided_slice %138 {offsets = [0, 128], sizes = [2, 128], strides = [1, 1]} : vector<2x256xf32> to vector<2x128xf32>
    %140 = vector.broadcast %7 : vector<1x128xf32> to vector<2x128xf32>
    %141 = arith.mulf %139, %140 : vector<2x128xf32>
    %142 = math.tanh %141 : vector<2x128xf32>
    %143 = vector.broadcast %7 : vector<1x128xf32> to vector<2x128xf32>
    %144 = arith.mulf %143, %142 : vector<2x128xf32>
    %145 = vector.broadcast %8 : vector<1x128xf32> to vector<2x128xf32>
    %146 = arith.addf %144, %145 : vector<2x128xf32>
    %147 = vector.extract_strided_slice %146 {offsets = [0, 0], sizes = [2, 32], strides = [1, 1]} : vector<2x128xf32> to vector<2x32xf32>
    %148 = vector.extract_strided_slice %146 {offsets = [0, 32], sizes = [2, 32], strides = [1, 1]} : vector<2x128xf32> to vector<2x32xf32>
    %149 = vector.extract_strided_slice %146 {offsets = [0, 64], sizes = [2, 32], strides = [1, 1]} : vector<2x128xf32> to vector<2x32xf32>
    %150 = vector.extract_strided_slice %146 {offsets = [0, 96], sizes = [2, 32], strides = [1, 1]} : vector<2x128xf32> to vector<2x32xf32>
    %151 = arith.mulf %148, %95 : vector<2x32xf32>
    %152 = arith.mulf %147, %149 : vector<2x32xf32>
    %153 = arith.addf %151, %152 : vector<2x32xf32>
    %154 = math.tanh %153 : vector<2x32xf32>
    %155 = arith.mulf %150, %154 : vector<2x32xf32>
    %156 = vector.broadcast %12 : vector<1x32xf32> to vector<2x32xf32>
    %157 = arith.mulf %155, %156 : vector<2x32xf32>
    %cst_35 = arith.constant dense<0.000000e+00> : vector<2xf32>
    %158 = vector.multi_reduction <add>, %157, %cst_35 [1] : vector<2x32xf32> to vector<2xf32>
    %159 = vector.shape_cast %158 : vector<2xf32> to vector<2x1xf32>
    %160 = arith.maximumf %102, %159 : vector<2x1xf32>
    %161 = arith.subf %102, %160 : vector<2x1xf32>
    %162 = math.exp %161 : vector<2x1xf32>
    %163 = arith.subf %159, %160 : vector<2x1xf32>
    %164 = math.exp %163 : vector<2x1xf32>
    %165 = arith.mulf %162, %108 : vector<2x1xf32>
    %166 = arith.addf %165, %164 : vector<2x1xf32>
    %167 = vector.broadcast %162 : vector<2x1xf32> to vector<2x32xf32>
    %168 = arith.mulf %167, %113 : vector<2x32xf32>
    %169 = vector.broadcast %164 : vector<2x1xf32> to vector<2x32xf32>
    %170 = arith.mulf %169, %155 : vector<2x32xf32>
    %171 = arith.addf %168, %170 : vector<2x32xf32>
    %172 = vector.extract_strided_slice %138 {offsets = [0, 0], sizes = [2, 128], strides = [1, 1]} : vector<2x256xf32> to vector<2x128xf32>
    %173 = vector.broadcast %7 : vector<1x128xf32> to vector<2x128xf32>
    %174 = arith.mulf %172, %173 : vector<2x128xf32>
    %175 = math.tanh %174 : vector<2x128xf32>
    %176 = vector.broadcast %7 : vector<1x128xf32> to vector<2x128xf32>
    %177 = arith.mulf %176, %175 : vector<2x128xf32>
    %178 = vector.broadcast %8 : vector<1x128xf32> to vector<2x128xf32>
    %179 = arith.addf %177, %178 : vector<2x128xf32>
    %180 = vector.extract_strided_slice %179 {offsets = [0, 0], sizes = [2, 32], strides = [1, 1]} : vector<2x128xf32> to vector<2x32xf32>
    %181 = vector.extract_strided_slice %179 {offsets = [0, 32], sizes = [2, 32], strides = [1, 1]} : vector<2x128xf32> to vector<2x32xf32>
    %182 = vector.extract_strided_slice %179 {offsets = [0, 64], sizes = [2, 32], strides = [1, 1]} : vector<2x128xf32> to vector<2x32xf32>
    %183 = vector.extract_strided_slice %179 {offsets = [0, 96], sizes = [2, 32], strides = [1, 1]} : vector<2x128xf32> to vector<2x32xf32>
    %184 = arith.mulf %181, %128 : vector<2x32xf32>
    %185 = arith.mulf %180, %182 : vector<2x32xf32>
    %186 = arith.addf %184, %185 : vector<2x32xf32>
    %187 = math.tanh %186 : vector<2x32xf32>
    %188 = arith.mulf %183, %187 : vector<2x32xf32>
    %189 = vector.extract_strided_slice %43 {offsets = [3, 0], sizes = [1, 32], strides = [1, 1]} : vector<16x32xf32> to vector<1x32xf32>
    %190 = vector.extract_strided_slice %43 {offsets = [11, 0], sizes = [1, 32], strides = [1, 1]} : vector<16x32xf32> to vector<1x32xf32>
    %191 = tpu.concatenate %189, %190 in 0 : vector<1x32xf32>, vector<1x32xf32> -> vector<2x32xf32>
    %192 = tpu.concatenate %191, %188, %188, %155 in 1 : vector<2x32xf32>, vector<2x32xf32>, vector<2x32xf32>, vector<2x32xf32> -> vector<2x128xf32>
    %193 = arith.truncf %192 : vector<2x128xf32> to vector<2x128xbf16>
    %cst_36 = arith.constant dense<0.000000e+00> : vector<2x256xf32>
    %194 = tpu.matmul %193, %0, %cst_36 {dimension_numbers = #tpu.dot_dimension_numbers<[1], [0], [0], [1], [0, 0, 1, 1], [], []>} : vector<2x128xbf16>, vector<128x256xbf16>, vector<2x256xf32> -> vector<2x256xf32>
    %195 = vector.broadcast %5 : vector<1x256xf32> to vector<2x256xf32>
    %196 = arith.addf %194, %195 : vector<2x256xf32>
    %197 = vector.extract_strided_slice %196 {offsets = [0, 128], sizes = [2, 128], strides = [1, 1]} : vector<2x256xf32> to vector<2x128xf32>
    %198 = vector.broadcast %7 : vector<1x128xf32> to vector<2x128xf32>
    %199 = arith.mulf %197, %198 : vector<2x128xf32>
    %200 = math.tanh %199 : vector<2x128xf32>
    %201 = vector.broadcast %7 : vector<1x128xf32> to vector<2x128xf32>
    %202 = arith.mulf %201, %200 : vector<2x128xf32>
    %203 = vector.broadcast %8 : vector<1x128xf32> to vector<2x128xf32>
    %204 = arith.addf %202, %203 : vector<2x128xf32>
    %205 = vector.extract_strided_slice %204 {offsets = [0, 0], sizes = [2, 32], strides = [1, 1]} : vector<2x128xf32> to vector<2x32xf32>
    %206 = vector.extract_strided_slice %204 {offsets = [0, 32], sizes = [2, 32], strides = [1, 1]} : vector<2x128xf32> to vector<2x32xf32>
    %207 = vector.extract_strided_slice %204 {offsets = [0, 64], sizes = [2, 32], strides = [1, 1]} : vector<2x128xf32> to vector<2x32xf32>
    %208 = vector.extract_strided_slice %204 {offsets = [0, 96], sizes = [2, 32], strides = [1, 1]} : vector<2x128xf32> to vector<2x32xf32>
    %209 = arith.mulf %206, %153 : vector<2x32xf32>
    %210 = arith.mulf %205, %207 : vector<2x32xf32>
    %211 = arith.addf %209, %210 : vector<2x32xf32>
    %212 = math.tanh %211 : vector<2x32xf32>
    %213 = arith.mulf %208, %212 : vector<2x32xf32>
    %214 = vector.broadcast %12 : vector<1x32xf32> to vector<2x32xf32>
    %215 = arith.mulf %213, %214 : vector<2x32xf32>
    %cst_37 = arith.constant dense<0.000000e+00> : vector<2xf32>
    %216 = vector.multi_reduction <add>, %215, %cst_37 [1] : vector<2x32xf32> to vector<2xf32>
    %217 = vector.shape_cast %216 : vector<2xf32> to vector<2x1xf32>
    %218 = arith.maximumf %160, %217 : vector<2x1xf32>
    %219 = arith.subf %160, %218 : vector<2x1xf32>
    %220 = math.exp %219 : vector<2x1xf32>
    %221 = arith.subf %217, %218 : vector<2x1xf32>
    %222 = math.exp %221 : vector<2x1xf32>
    %223 = arith.mulf %220, %166 : vector<2x1xf32>
    %224 = arith.addf %223, %222 : vector<2x1xf32>
    %225 = vector.broadcast %220 : vector<2x1xf32> to vector<2x32xf32>
    %226 = arith.mulf %225, %171 : vector<2x32xf32>
    %227 = vector.broadcast %222 : vector<2x1xf32> to vector<2x32xf32>
    %228 = arith.mulf %227, %213 : vector<2x32xf32>
    %229 = arith.addf %226, %228 : vector<2x32xf32>
    %230 = vector.extract_strided_slice %196 {offsets = [0, 0], sizes = [2, 128], strides = [1, 1]} : vector<2x256xf32> to vector<2x128xf32>
    %231 = vector.broadcast %7 : vector<1x128xf32> to vector<2x128xf32>
    %232 = arith.mulf %230, %231 : vector<2x128xf32>
    %233 = math.tanh %232 : vector<2x128xf32>
    %234 = vector.broadcast %7 : vector<1x128xf32> to vector<2x128xf32>
    %235 = arith.mulf %234, %233 : vector<2x128xf32>
    %236 = vector.broadcast %8 : vector<1x128xf32> to vector<2x128xf32>
    %237 = arith.addf %235, %236 : vector<2x128xf32>
    %238 = vector.extract_strided_slice %237 {offsets = [0, 0], sizes = [2, 32], strides = [1, 1]} : vector<2x128xf32> to vector<2x32xf32>
    %239 = vector.extract_strided_slice %237 {offsets = [0, 32], sizes = [2, 32], strides = [1, 1]} : vector<2x128xf32> to vector<2x32xf32>
    %240 = vector.extract_strided_slice %237 {offsets = [0, 64], sizes = [2, 32], strides = [1, 1]} : vector<2x128xf32> to vector<2x32xf32>
    %241 = vector.extract_strided_slice %237 {offsets = [0, 96], sizes = [2, 32], strides = [1, 1]} : vector<2x128xf32> to vector<2x32xf32>
    %242 = arith.mulf %239, %186 : vector<2x32xf32>
    %243 = arith.mulf %238, %240 : vector<2x32xf32>
    %244 = arith.addf %242, %243 : vector<2x32xf32>
    %245 = math.tanh %244 : vector<2x32xf32>
    %246 = arith.mulf %241, %245 : vector<2x32xf32>
    %247 = vector.extract_strided_slice %43 {offsets = [4, 0], sizes = [1, 32], strides = [1, 1]} : vector<16x32xf32> to vector<1x32xf32>
    %248 = vector.extract_strided_slice %43 {offsets = [12, 0], sizes = [1, 32], strides = [1, 1]} : vector<16x32xf32> to vector<1x32xf32>
    %249 = tpu.concatenate %247, %248 in 0 : vector<1x32xf32>, vector<1x32xf32> -> vector<2x32xf32>
    %250 = tpu.concatenate %249, %246, %246, %213 in 1 : vector<2x32xf32>, vector<2x32xf32>, vector<2x32xf32>, vector<2x32xf32> -> vector<2x128xf32>
    %251 = arith.truncf %250 : vector<2x128xf32> to vector<2x128xbf16>
    %cst_38 = arith.constant dense<0.000000e+00> : vector<2x256xf32>
    %252 = tpu.matmul %251, %0, %cst_38 {dimension_numbers = #tpu.dot_dimension_numbers<[1], [0], [0], [1], [0, 0, 1, 1], [], []>} : vector<2x128xbf16>, vector<128x256xbf16>, vector<2x256xf32> -> vector<2x256xf32>
    %253 = vector.broadcast %5 : vector<1x256xf32> to vector<2x256xf32>
    %254 = arith.addf %252, %253 : vector<2x256xf32>
    %255 = vector.extract_strided_slice %254 {offsets = [0, 128], sizes = [2, 128], strides = [1, 1]} : vector<2x256xf32> to vector<2x128xf32>
    %256 = vector.broadcast %7 : vector<1x128xf32> to vector<2x128xf32>
    %257 = arith.mulf %255, %256 : vector<2x128xf32>
    %258 = math.tanh %257 : vector<2x128xf32>
    %259 = vector.broadcast %7 : vector<1x128xf32> to vector<2x128xf32>
    %260 = arith.mulf %259, %258 : vector<2x128xf32>
    %261 = vector.broadcast %8 : vector<1x128xf32> to vector<2x128xf32>
    %262 = arith.addf %260, %261 : vector<2x128xf32>
    %263 = vector.extract_strided_slice %262 {offsets = [0, 0], sizes = [2, 32], strides = [1, 1]} : vector<2x128xf32> to vector<2x32xf32>
    %264 = vector.extract_strided_slice %262 {offsets = [0, 32], sizes = [2, 32], strides = [1, 1]} : vector<2x128xf32> to vector<2x32xf32>
    %265 = vector.extract_strided_slice %262 {offsets = [0, 64], sizes = [2, 32], strides = [1, 1]} : vector<2x128xf32> to vector<2x32xf32>
    %266 = vector.extract_strided_slice %262 {offsets = [0, 96], sizes = [2, 32], strides = [1, 1]} : vector<2x128xf32> to vector<2x32xf32>
    %267 = arith.mulf %264, %211 : vector<2x32xf32>
    %268 = arith.mulf %263, %265 : vector<2x32xf32>
    %269 = arith.addf %267, %268 : vector<2x32xf32>
    %270 = math.tanh %269 : vector<2x32xf32>
    %271 = arith.mulf %266, %270 : vector<2x32xf32>
    %272 = vector.broadcast %12 : vector<1x32xf32> to vector<2x32xf32>
    %273 = arith.mulf %271, %272 : vector<2x32xf32>
    %cst_39 = arith.constant dense<0.000000e+00> : vector<2xf32>
    %274 = vector.multi_reduction <add>, %273, %cst_39 [1] : vector<2x32xf32> to vector<2xf32>
    %275 = vector.shape_cast %274 : vector<2xf32> to vector<2x1xf32>
    %276 = arith.maximumf %218, %275 : vector<2x1xf32>
    %277 = arith.subf %218, %276 : vector<2x1xf32>
    %278 = math.exp %277 : vector<2x1xf32>
    %279 = arith.subf %275, %276 : vector<2x1xf32>
    %280 = math.exp %279 : vector<2x1xf32>
    %281 = arith.mulf %278, %224 : vector<2x1xf32>
    %282 = arith.addf %281, %280 : vector<2x1xf32>
    %283 = vector.broadcast %278 : vector<2x1xf32> to vector<2x32xf32>
    %284 = arith.mulf %283, %229 : vector<2x32xf32>
    %285 = vector.broadcast %280 : vector<2x1xf32> to vector<2x32xf32>
    %286 = arith.mulf %285, %271 : vector<2x32xf32>
    %287 = arith.addf %284, %286 : vector<2x32xf32>
    %288 = vector.extract_strided_slice %254 {offsets = [0, 0], sizes = [2, 128], strides = [1, 1]} : vector<2x256xf32> to vector<2x128xf32>
    %289 = vector.broadcast %7 : vector<1x128xf32> to vector<2x128xf32>
    %290 = arith.mulf %288, %289 : vector<2x128xf32>
    %291 = math.tanh %290 : vector<2x128xf32>
    %292 = vector.broadcast %7 : vector<1x128xf32> to vector<2x128xf32>
    %293 = arith.mulf %292, %291 : vector<2x128xf32>
    %294 = vector.broadcast %8 : vector<1x128xf32> to vector<2x128xf32>
    %295 = arith.addf %293, %294 : vector<2x128xf32>
    %296 = vector.extract_strided_slice %295 {offsets = [0, 0], sizes = [2, 32], strides = [1, 1]} : vector<2x128xf32> to vector<2x32xf32>
    %297 = vector.extract_strided_slice %295 {offsets = [0, 32], sizes = [2, 32], strides = [1, 1]} : vector<2x128xf32> to vector<2x32xf32>
    %298 = vector.extract_strided_slice %295 {offsets = [0, 64], sizes = [2, 32], strides = [1, 1]} : vector<2x128xf32> to vector<2x32xf32>
    %299 = vector.extract_strided_slice %295 {offsets = [0, 96], sizes = [2, 32], strides = [1, 1]} : vector<2x128xf32> to vector<2x32xf32>
    %300 = arith.mulf %297, %244 : vector<2x32xf32>
    %301 = arith.mulf %296, %298 : vector<2x32xf32>
    %302 = arith.addf %300, %301 : vector<2x32xf32>
    %303 = math.tanh %302 : vector<2x32xf32>
    %304 = arith.mulf %299, %303 : vector<2x32xf32>
    %305 = vector.extract_strided_slice %43 {offsets = [5, 0], sizes = [1, 32], strides = [1, 1]} : vector<16x32xf32> to vector<1x32xf32>
    %306 = vector.extract_strided_slice %43 {offsets = [13, 0], sizes = [1, 32], strides = [1, 1]} : vector<16x32xf32> to vector<1x32xf32>
    %307 = tpu.concatenate %305, %306 in 0 : vector<1x32xf32>, vector<1x32xf32> -> vector<2x32xf32>
    %308 = tpu.concatenate %307, %304, %304, %271 in 1 : vector<2x32xf32>, vector<2x32xf32>, vector<2x32xf32>, vector<2x32xf32> -> vector<2x128xf32>
    %309 = arith.truncf %308 : vector<2x128xf32> to vector<2x128xbf16>
    %cst_40 = arith.constant dense<0.000000e+00> : vector<2x256xf32>
    %310 = tpu.matmul %309, %0, %cst_40 {dimension_numbers = #tpu.dot_dimension_numbers<[1], [0], [0], [1], [0, 0, 1, 1], [], []>} : vector<2x128xbf16>, vector<128x256xbf16>, vector<2x256xf32> -> vector<2x256xf32>
    %311 = vector.broadcast %5 : vector<1x256xf32> to vector<2x256xf32>
    %312 = arith.addf %310, %311 : vector<2x256xf32>
    %313 = vector.extract_strided_slice %312 {offsets = [0, 128], sizes = [2, 128], strides = [1, 1]} : vector<2x256xf32> to vector<2x128xf32>
    %314 = vector.broadcast %7 : vector<1x128xf32> to vector<2x128xf32>
    %315 = arith.mulf %313, %314 : vector<2x128xf32>
    %316 = math.tanh %315 : vector<2x128xf32>
    %317 = vector.broadcast %7 : vector<1x128xf32> to vector<2x128xf32>
    %318 = arith.mulf %317, %316 : vector<2x128xf32>
    %319 = vector.broadcast %8 : vector<1x128xf32> to vector<2x128xf32>
    %320 = arith.addf %318, %319 : vector<2x128xf32>
    %321 = vector.extract_strided_slice %320 {offsets = [0, 0], sizes = [2, 32], strides = [1, 1]} : vector<2x128xf32> to vector<2x32xf32>
    %322 = vector.extract_strided_slice %320 {offsets = [0, 32], sizes = [2, 32], strides = [1, 1]} : vector<2x128xf32> to vector<2x32xf32>
    %323 = vector.extract_strided_slice %320 {offsets = [0, 64], sizes = [2, 32], strides = [1, 1]} : vector<2x128xf32> to vector<2x32xf32>
    %324 = vector.extract_strided_slice %320 {offsets = [0, 96], sizes = [2, 32], strides = [1, 1]} : vector<2x128xf32> to vector<2x32xf32>
    %325 = arith.mulf %322, %269 : vector<2x32xf32>
    %326 = arith.mulf %321, %323 : vector<2x32xf32>
    %327 = arith.addf %325, %326 : vector<2x32xf32>
    %328 = math.tanh %327 : vector<2x32xf32>
    %329 = arith.mulf %324, %328 : vector<2x32xf32>
    %330 = vector.broadcast %12 : vector<1x32xf32> to vector<2x32xf32>
    %331 = arith.mulf %329, %330 : vector<2x32xf32>
    %cst_41 = arith.constant dense<0.000000e+00> : vector<2xf32>
    %332 = vector.multi_reduction <add>, %331, %cst_41 [1] : vector<2x32xf32> to vector<2xf32>
    %333 = vector.shape_cast %332 : vector<2xf32> to vector<2x1xf32>
    %334 = arith.maximumf %276, %333 : vector<2x1xf32>
    %335 = arith.subf %276, %334 : vector<2x1xf32>
    %336 = math.exp %335 : vector<2x1xf32>
    %337 = arith.subf %333, %334 : vector<2x1xf32>
    %338 = math.exp %337 : vector<2x1xf32>
    %339 = arith.mulf %336, %282 : vector<2x1xf32>
    %340 = arith.addf %339, %338 : vector<2x1xf32>
    %341 = vector.broadcast %336 : vector<2x1xf32> to vector<2x32xf32>
    %342 = arith.mulf %341, %287 : vector<2x32xf32>
    %343 = vector.broadcast %338 : vector<2x1xf32> to vector<2x32xf32>
    %344 = arith.mulf %343, %329 : vector<2x32xf32>
    %345 = arith.addf %342, %344 : vector<2x32xf32>
    %346 = vector.extract_strided_slice %312 {offsets = [0, 0], sizes = [2, 128], strides = [1, 1]} : vector<2x256xf32> to vector<2x128xf32>
    %347 = vector.broadcast %7 : vector<1x128xf32> to vector<2x128xf32>
    %348 = arith.mulf %346, %347 : vector<2x128xf32>
    %349 = math.tanh %348 : vector<2x128xf32>
    %350 = vector.broadcast %7 : vector<1x128xf32> to vector<2x128xf32>
    %351 = arith.mulf %350, %349 : vector<2x128xf32>
    %352 = vector.broadcast %8 : vector<1x128xf32> to vector<2x128xf32>
    %353 = arith.addf %351, %352 : vector<2x128xf32>
    %354 = vector.extract_strided_slice %353 {offsets = [0, 0], sizes = [2, 32], strides = [1, 1]} : vector<2x128xf32> to vector<2x32xf32>
    %355 = vector.extract_strided_slice %353 {offsets = [0, 32], sizes = [2, 32], strides = [1, 1]} : vector<2x128xf32> to vector<2x32xf32>
    %356 = vector.extract_strided_slice %353 {offsets = [0, 64], sizes = [2, 32], strides = [1, 1]} : vector<2x128xf32> to vector<2x32xf32>
    %357 = vector.extract_strided_slice %353 {offsets = [0, 96], sizes = [2, 32], strides = [1, 1]} : vector<2x128xf32> to vector<2x32xf32>
    %358 = arith.mulf %355, %302 : vector<2x32xf32>
    %359 = arith.mulf %354, %356 : vector<2x32xf32>
    %360 = arith.addf %358, %359 : vector<2x32xf32>
    %361 = math.tanh %360 : vector<2x32xf32>
    %362 = arith.mulf %357, %361 : vector<2x32xf32>
    %363 = vector.extract_strided_slice %43 {offsets = [6, 0], sizes = [1, 32], strides = [1, 1]} : vector<16x32xf32> to vector<1x32xf32>
    %364 = vector.extract_strided_slice %43 {offsets = [14, 0], sizes = [1, 32], strides = [1, 1]} : vector<16x32xf32> to vector<1x32xf32>
    %365 = tpu.concatenate %363, %364 in 0 : vector<1x32xf32>, vector<1x32xf32> -> vector<2x32xf32>
    %366 = tpu.concatenate %365, %362, %362, %329 in 1 : vector<2x32xf32>, vector<2x32xf32>, vector<2x32xf32>, vector<2x32xf32> -> vector<2x128xf32>
    %367 = arith.truncf %366 : vector<2x128xf32> to vector<2x128xbf16>
    %cst_42 = arith.constant dense<0.000000e+00> : vector<2x256xf32>
    %368 = tpu.matmul %367, %0, %cst_42 {dimension_numbers = #tpu.dot_dimension_numbers<[1], [0], [0], [1], [0, 0, 1, 1], [], []>} : vector<2x128xbf16>, vector<128x256xbf16>, vector<2x256xf32> -> vector<2x256xf32>
    %369 = vector.broadcast %5 : vector<1x256xf32> to vector<2x256xf32>
    %370 = arith.addf %368, %369 : vector<2x256xf32>
    %371 = vector.extract_strided_slice %370 {offsets = [0, 128], sizes = [2, 128], strides = [1, 1]} : vector<2x256xf32> to vector<2x128xf32>
    %372 = vector.broadcast %7 : vector<1x128xf32> to vector<2x128xf32>
    %373 = arith.mulf %371, %372 : vector<2x128xf32>
    %374 = math.tanh %373 : vector<2x128xf32>
    %375 = vector.broadcast %7 : vector<1x128xf32> to vector<2x128xf32>
    %376 = arith.mulf %375, %374 : vector<2x128xf32>
    %377 = vector.broadcast %8 : vector<1x128xf32> to vector<2x128xf32>
    %378 = arith.addf %376, %377 : vector<2x128xf32>
    %379 = vector.extract_strided_slice %378 {offsets = [0, 0], sizes = [2, 32], strides = [1, 1]} : vector<2x128xf32> to vector<2x32xf32>
    %380 = vector.extract_strided_slice %378 {offsets = [0, 32], sizes = [2, 32], strides = [1, 1]} : vector<2x128xf32> to vector<2x32xf32>
    %381 = vector.extract_strided_slice %378 {offsets = [0, 64], sizes = [2, 32], strides = [1, 1]} : vector<2x128xf32> to vector<2x32xf32>
    %382 = vector.extract_strided_slice %378 {offsets = [0, 96], sizes = [2, 32], strides = [1, 1]} : vector<2x128xf32> to vector<2x32xf32>
    %383 = arith.mulf %380, %327 : vector<2x32xf32>
    %384 = arith.mulf %379, %381 : vector<2x32xf32>
    %385 = arith.addf %383, %384 : vector<2x32xf32>
    %386 = math.tanh %385 : vector<2x32xf32>
    %387 = arith.mulf %382, %386 : vector<2x32xf32>
    %388 = vector.broadcast %12 : vector<1x32xf32> to vector<2x32xf32>
    %389 = arith.mulf %387, %388 : vector<2x32xf32>
    %cst_43 = arith.constant dense<0.000000e+00> : vector<2xf32>
    %390 = vector.multi_reduction <add>, %389, %cst_43 [1] : vector<2x32xf32> to vector<2xf32>
    %391 = vector.shape_cast %390 : vector<2xf32> to vector<2x1xf32>
    %392 = arith.maximumf %334, %391 : vector<2x1xf32>
    %393 = arith.subf %334, %392 : vector<2x1xf32>
    %394 = math.exp %393 : vector<2x1xf32>
    %395 = arith.subf %391, %392 : vector<2x1xf32>
    %396 = math.exp %395 : vector<2x1xf32>
    %397 = arith.mulf %394, %340 : vector<2x1xf32>
    %398 = arith.addf %397, %396 : vector<2x1xf32>
    %399 = vector.broadcast %394 : vector<2x1xf32> to vector<2x32xf32>
    %400 = arith.mulf %399, %345 : vector<2x32xf32>
    %401 = vector.broadcast %396 : vector<2x1xf32> to vector<2x32xf32>
    %402 = arith.mulf %401, %387 : vector<2x32xf32>
    %403 = arith.addf %400, %402 : vector<2x32xf32>
    %404 = vector.extract_strided_slice %370 {offsets = [0, 0], sizes = [2, 128], strides = [1, 1]} : vector<2x256xf32> to vector<2x128xf32>
    %405 = vector.broadcast %7 : vector<1x128xf32> to vector<2x128xf32>
    %406 = arith.mulf %404, %405 : vector<2x128xf32>
    %407 = math.tanh %406 : vector<2x128xf32>
    %408 = vector.broadcast %7 : vector<1x128xf32> to vector<2x128xf32>
    %409 = arith.mulf %408, %407 : vector<2x128xf32>
    %410 = vector.broadcast %8 : vector<1x128xf32> to vector<2x128xf32>
    %411 = arith.addf %409, %410 : vector<2x128xf32>
    %412 = vector.extract_strided_slice %411 {offsets = [0, 0], sizes = [2, 32], strides = [1, 1]} : vector<2x128xf32> to vector<2x32xf32>
    %413 = vector.extract_strided_slice %411 {offsets = [0, 32], sizes = [2, 32], strides = [1, 1]} : vector<2x128xf32> to vector<2x32xf32>
    %414 = vector.extract_strided_slice %411 {offsets = [0, 64], sizes = [2, 32], strides = [1, 1]} : vector<2x128xf32> to vector<2x32xf32>
    %415 = vector.extract_strided_slice %411 {offsets = [0, 96], sizes = [2, 32], strides = [1, 1]} : vector<2x128xf32> to vector<2x32xf32>
    %416 = arith.mulf %413, %360 : vector<2x32xf32>
    %417 = arith.mulf %412, %414 : vector<2x32xf32>
    %418 = arith.addf %416, %417 : vector<2x32xf32>
    %419 = math.tanh %418 : vector<2x32xf32>
    %420 = arith.mulf %415, %419 : vector<2x32xf32>
    %421 = vector.extract_strided_slice %43 {offsets = [7, 0], sizes = [1, 32], strides = [1, 1]} : vector<16x32xf32> to vector<1x32xf32>
    %422 = vector.extract_strided_slice %43 {offsets = [15, 0], sizes = [1, 32], strides = [1, 1]} : vector<16x32xf32> to vector<1x32xf32>
    %423 = tpu.concatenate %421, %422 in 0 : vector<1x32xf32>, vector<1x32xf32> -> vector<2x32xf32>
    %424 = tpu.concatenate %423, %420, %420, %387 in 1 : vector<2x32xf32>, vector<2x32xf32>, vector<2x32xf32>, vector<2x32xf32> -> vector<2x128xf32>
    %425 = arith.truncf %424 : vector<2x128xf32> to vector<2x128xbf16>
    %cst_44 = arith.constant dense<0.000000e+00> : vector<2x256xf32>
    %426 = tpu.matmul %425, %0, %cst_44 {dimension_numbers = #tpu.dot_dimension_numbers<[1], [0], [0], [1], [0, 0, 1, 1], [], []>} : vector<2x128xbf16>, vector<128x256xbf16>, vector<2x256xf32> -> vector<2x256xf32>
    %427 = vector.broadcast %5 : vector<1x256xf32> to vector<2x256xf32>
    %428 = arith.addf %426, %427 : vector<2x256xf32>
    %429 = vector.extract_strided_slice %428 {offsets = [0, 128], sizes = [2, 128], strides = [1, 1]} : vector<2x256xf32> to vector<2x128xf32>
    %430 = vector.broadcast %7 : vector<1x128xf32> to vector<2x128xf32>
    %431 = arith.mulf %429, %430 : vector<2x128xf32>
    %432 = math.tanh %431 : vector<2x128xf32>
    %433 = vector.broadcast %7 : vector<1x128xf32> to vector<2x128xf32>
    %434 = arith.mulf %433, %432 : vector<2x128xf32>
    %435 = vector.broadcast %8 : vector<1x128xf32> to vector<2x128xf32>
    %436 = arith.addf %434, %435 : vector<2x128xf32>
    %437 = vector.extract_strided_slice %436 {offsets = [0, 0], sizes = [2, 32], strides = [1, 1]} : vector<2x128xf32> to vector<2x32xf32>
    %438 = vector.extract_strided_slice %436 {offsets = [0, 32], sizes = [2, 32], strides = [1, 1]} : vector<2x128xf32> to vector<2x32xf32>
    %439 = vector.extract_strided_slice %436 {offsets = [0, 64], sizes = [2, 32], strides = [1, 1]} : vector<2x128xf32> to vector<2x32xf32>
    %440 = vector.extract_strided_slice %436 {offsets = [0, 96], sizes = [2, 32], strides = [1, 1]} : vector<2x128xf32> to vector<2x32xf32>
    %441 = arith.mulf %438, %385 : vector<2x32xf32>
    %442 = arith.mulf %437, %439 : vector<2x32xf32>
    %443 = arith.addf %441, %442 : vector<2x32xf32>
    %444 = math.tanh %443 : vector<2x32xf32>
    %445 = arith.mulf %440, %444 : vector<2x32xf32>
    %446 = vector.broadcast %12 : vector<1x32xf32> to vector<2x32xf32>
    %447 = arith.mulf %445, %446 : vector<2x32xf32>
    %cst_45 = arith.constant dense<0.000000e+00> : vector<2xf32>
    %448 = vector.multi_reduction <add>, %447, %cst_45 [1] : vector<2x32xf32> to vector<2xf32>
    %449 = vector.shape_cast %448 : vector<2xf32> to vector<2x1xf32>
    %450 = arith.maximumf %392, %449 : vector<2x1xf32>
    %451 = arith.subf %392, %450 : vector<2x1xf32>
    %452 = math.exp %451 : vector<2x1xf32>
    %453 = arith.subf %449, %450 : vector<2x1xf32>
    %454 = math.exp %453 : vector<2x1xf32>
    %455 = arith.mulf %452, %398 : vector<2x1xf32>
    %456 = arith.addf %455, %454 : vector<2x1xf32>
    %457 = vector.broadcast %452 : vector<2x1xf32> to vector<2x32xf32>
    %458 = arith.mulf %457, %403 : vector<2x32xf32>
    %459 = vector.broadcast %454 : vector<2x1xf32> to vector<2x32xf32>
    %460 = arith.mulf %459, %445 : vector<2x32xf32>
    %461 = arith.addf %458, %460 : vector<2x32xf32>
    %462 = vector.extract_strided_slice %428 {offsets = [0, 0], sizes = [2, 128], strides = [1, 1]} : vector<2x256xf32> to vector<2x128xf32>
    %463 = vector.broadcast %7 : vector<1x128xf32> to vector<2x128xf32>
    %464 = arith.mulf %462, %463 : vector<2x128xf32>
    %465 = math.tanh %464 : vector<2x128xf32>
    %466 = vector.broadcast %7 : vector<1x128xf32> to vector<2x128xf32>
    %467 = arith.mulf %466, %465 : vector<2x128xf32>
    %468 = vector.broadcast %8 : vector<1x128xf32> to vector<2x128xf32>
    %469 = arith.addf %467, %468 : vector<2x128xf32>
    %470 = vector.extract_strided_slice %469 {offsets = [0, 0], sizes = [2, 32], strides = [1, 1]} : vector<2x128xf32> to vector<2x32xf32>
    %471 = vector.extract_strided_slice %469 {offsets = [0, 32], sizes = [2, 32], strides = [1, 1]} : vector<2x128xf32> to vector<2x32xf32>
    %472 = vector.extract_strided_slice %469 {offsets = [0, 64], sizes = [2, 32], strides = [1, 1]} : vector<2x128xf32> to vector<2x32xf32>
    %473 = vector.extract_strided_slice %469 {offsets = [0, 96], sizes = [2, 32], strides = [1, 1]} : vector<2x128xf32> to vector<2x32xf32>
    %474 = arith.mulf %471, %418 : vector<2x32xf32>
    %475 = arith.mulf %470, %472 : vector<2x32xf32>
    %476 = arith.addf %474, %475 : vector<2x32xf32>
    %477 = math.tanh %476 : vector<2x32xf32>
    %478 = arith.mulf %473, %477 : vector<2x32xf32>
    %479 = tpu.concatenate %478, %445 in 1 : vector<2x32xf32>, vector<2x32xf32> -> vector<2x64xf32>
    %480 = arith.truncf %479 : vector<2x64xf32> to vector<2x64xbf16>
    %cst_46 = arith.constant dense<0.000000e+00> : vector<2x128xf32>
    %481 = tpu.matmul %480, %1, %cst_46 {dimension_numbers = #tpu.dot_dimension_numbers<[1], [0], [0], [1], [0, 0, 1, 1], [], []>} : vector<2x64xbf16>, vector<64x128xbf16>, vector<2x128xf32> -> vector<2x128xf32>
    %482 = vector.broadcast %6 : vector<1x128xf32> to vector<2x128xf32>
    %483 = arith.addf %481, %482 : vector<2x128xf32>
    %484 = vector.broadcast %7 : vector<1x128xf32> to vector<2x128xf32>
    %485 = arith.mulf %483, %484 : vector<2x128xf32>
    %486 = math.tanh %485 : vector<2x128xf32>
    %487 = vector.broadcast %7 : vector<1x128xf32> to vector<2x128xf32>
    %488 = arith.mulf %487, %486 : vector<2x128xf32>
    %489 = vector.broadcast %8 : vector<1x128xf32> to vector<2x128xf32>
    %490 = arith.addf %488, %489 : vector<2x128xf32>
    %491 = vector.extract_strided_slice %490 {offsets = [0, 0], sizes = [2, 32], strides = [1, 1]} : vector<2x128xf32> to vector<2x32xf32>
    %492 = vector.extract_strided_slice %490 {offsets = [0, 32], sizes = [2, 32], strides = [1, 1]} : vector<2x128xf32> to vector<2x32xf32>
    %493 = vector.extract_strided_slice %490 {offsets = [0, 64], sizes = [2, 32], strides = [1, 1]} : vector<2x128xf32> to vector<2x32xf32>
    %494 = vector.extract_strided_slice %490 {offsets = [0, 96], sizes = [2, 32], strides = [1, 1]} : vector<2x128xf32> to vector<2x32xf32>
    %495 = arith.mulf %492, %443 : vector<2x32xf32>
    %496 = arith.mulf %491, %493 : vector<2x32xf32>
    %497 = arith.addf %495, %496 : vector<2x32xf32>
    %498 = math.tanh %497 : vector<2x32xf32>
    %499 = arith.mulf %494, %498 : vector<2x32xf32>
    %500 = vector.broadcast %12 : vector<1x32xf32> to vector<2x32xf32>
    %501 = arith.mulf %499, %500 : vector<2x32xf32>
    %cst_47 = arith.constant dense<0.000000e+00> : vector<2xf32>
    %502 = vector.multi_reduction <add>, %501, %cst_47 [1] : vector<2x32xf32> to vector<2xf32>
    %503 = vector.shape_cast %502 : vector<2xf32> to vector<2x1xf32>
    %504 = arith.maximumf %450, %503 : vector<2x1xf32>
    %505 = arith.subf %450, %504 : vector<2x1xf32>
    %506 = math.exp %505 : vector<2x1xf32>
    %507 = arith.subf %503, %504 : vector<2x1xf32>
    %508 = math.exp %507 : vector<2x1xf32>
    %509 = arith.mulf %506, %456 : vector<2x1xf32>
    %510 = arith.addf %509, %508 : vector<2x1xf32>
    %511 = vector.broadcast %506 : vector<2x1xf32> to vector<2x32xf32>
    %512 = arith.mulf %511, %461 : vector<2x32xf32>
    %513 = vector.broadcast %508 : vector<2x1xf32> to vector<2x32xf32>
    %514 = arith.mulf %513, %499 : vector<2x32xf32>
    %515 = arith.addf %512, %514 : vector<2x32xf32>
    %516 = vector.broadcast %510 : vector<2x1xf32> to vector<2x32xf32>
    %517 = arith.divf %515, %516 : vector<2x32xf32>
    %518 = arith.addf %517, %499 : vector<2x32xf32>
    %519 = arith.truncf %518 : vector<2x32xf32> to vector<2x32xbf16>
    %cst_48 = arith.constant dense<0.000000e+00> : vector<2x32xf32>
    %520 = tpu.matmul %519, %3, %cst_48 {dimension_numbers = #tpu.dot_dimension_numbers<[1], [0], [0], [1], [0, 0, 1, 1], [], []>} : vector<2x32xbf16>, vector<32x32xbf16>, vector<2x32xf32> -> vector<2x32xf32>
    %521 = vector.broadcast %13 : vector<1x32xf32> to vector<2x32xf32>
    %522 = arith.addf %520, %521 : vector<2x32xf32>
    %cst_49 = arith.constant dense<0.000000e+00> : vector<2xf32>
    %523 = vector.multi_reduction <add>, %522, %cst_49 [1] : vector<2x32xf32> to vector<2xf32>
    %524 = vector.shape_cast %523 : vector<2xf32> to vector<2x1xf32>
    %cst_50 = arith.constant 3.200000e+01 : f32
    %525 = vector.broadcast %cst_50 : f32 to vector<2x1xf32>
    %526 = arith.divf %524, %525 : vector<2x1xf32>
    %527 = vector.broadcast %526 : vector<2x1xf32> to vector<2x32xf32>
    %528 = arith.subf %522, %527 : vector<2x32xf32>
    %529 = arith.mulf %528, %528 : vector<2x32xf32>
    %cst_51 = arith.constant dense<0.000000e+00> : vector<2xf32>
    %530 = vector.multi_reduction <add>, %529, %cst_51 [1] : vector<2x32xf32> to vector<2xf32>
    %531 = vector.shape_cast %530 : vector<2xf32> to vector<2x1xf32>
    %cst_52 = arith.constant 3.200000e+01 : f32
    %532 = vector.broadcast %cst_52 : f32 to vector<2x1xf32>
    %533 = arith.divf %531, %532 : vector<2x1xf32>
    %534 = vector.broadcast %526 : vector<2x1xf32> to vector<2x32xf32>
    %535 = arith.subf %522, %534 : vector<2x32xf32>
    %cst_53 = arith.constant 9.99999974E-6 : f32
    %536 = vector.broadcast %cst_53 : f32 to vector<2x1xf32>
    %537 = arith.addf %533, %536 : vector<2x1xf32>
    %538 = math.rsqrt %537 : vector<2x1xf32>
    %539 = vector.broadcast %538 : vector<2x1xf32> to vector<2x32xf32>
    %540 = arith.mulf %535, %539 : vector<2x32xf32>
    %541 = vector.broadcast %14 : vector<1x32xf32> to vector<2x32xf32>
    %542 = arith.mulf %540, %541 : vector<2x32xf32>
    %543 = vector.broadcast %15 : vector<1x32xf32> to vector<2x32xf32>
    %544 = arith.addf %542, %543 : vector<2x32xf32>
    %cst_54 = arith.constant 5.000000e-01 : f32
    %545 = vector.broadcast %cst_54 : f32 to vector<2x32xf32>
    %546 = arith.mulf %545, %544 : vector<2x32xf32>
    %cst_55 = arith.constant 0.707106769 : f32
    %547 = vector.broadcast %cst_55 : f32 to vector<2x32xf32>
    %548 = arith.mulf %544, %547 : vector<2x32xf32>
    %cst_56 = arith.constant 0.000000e+00 : f32
    %549 = vector.broadcast %cst_56 : f32 to vector<2x32xf32>
    %550 = arith.cmpf oge, %548, %549 : vector<2x32xf32>
    %cst_57 = arith.constant 1.000000e+00 : f32
    %cst_58 = arith.constant -1.000000e+00 : f32
    %551 = vector.broadcast %cst_57 : f32 to vector<2x32xf32>
    %552 = vector.broadcast %cst_58 : f32 to vector<2x32xf32>
    %553 = arith.select %550, %551, %552 : vector<2x32xi1>, vector<2x32xf32>
    %554 = math.absf %548 : vector<2x32xf32>
    %cst_59 = arith.constant 0.327591091 : f32
    %555 = vector.broadcast %cst_59 : f32 to vector<2x32xf32>
    %556 = arith.mulf %555, %554 : vector<2x32xf32>
    %cst_60 = arith.constant 1.000000e+00 : f32
    %557 = vector.broadcast %cst_60 : f32 to vector<2x32xf32>
    %558 = arith.addf %557, %556 : vector<2x32xf32>
    %cst_61 = arith.constant 1.000000e+00 : f32
    %559 = vector.broadcast %cst_61 : f32 to vector<2x32xf32>
    %560 = arith.divf %559, %558 : vector<2x32xf32>
    %cst_62 = arith.constant 1.06140542 : f32
    %561 = vector.broadcast %cst_62 : f32 to vector<2x32xf32>
    %562 = arith.mulf %561, %560 : vector<2x32xf32>
    %cst_63 = arith.constant -1.45315206 : f32
    %563 = vector.broadcast %cst_63 : f32 to vector<2x32xf32>
    %564 = arith.addf %562, %563 : vector<2x32xf32>
    %565 = arith.mulf %564, %560 : vector<2x32xf32>
    %cst_64 = arith.constant 1.42141378 : f32
    %566 = vector.broadcast %cst_64 : f32 to vector<2x32xf32>
    %567 = arith.addf %565, %566 : vector<2x32xf32>
    %568 = arith.mulf %567, %560 : vector<2x32xf32>
    %cst_65 = arith.constant -0.284496725 : f32
    %569 = vector.broadcast %cst_65 : f32 to vector<2x32xf32>
    %570 = arith.addf %568, %569 : vector<2x32xf32>
    %571 = arith.mulf %570, %560 : vector<2x32xf32>
    %cst_66 = arith.constant 0.254829586 : f32
    %572 = vector.broadcast %cst_66 : f32 to vector<2x32xf32>
    %573 = arith.addf %571, %572 : vector<2x32xf32>
    %574 = arith.mulf %573, %560 : vector<2x32xf32>
    %cst_67 = arith.constant 0.000000e+00 : f32
    %575 = vector.broadcast %cst_67 : f32 to vector<2x32xf32>
    %576 = arith.subf %575, %554 : vector<2x32xf32>
    %577 = arith.mulf %576, %554 : vector<2x32xf32>
    %578 = math.exp %577 : vector<2x32xf32>
    %579 = arith.mulf %574, %578 : vector<2x32xf32>
    %cst_68 = arith.constant 1.000000e+00 : f32
    %580 = vector.broadcast %cst_68 : f32 to vector<2x32xf32>
    %581 = arith.subf %580, %579 : vector<2x32xf32>
    %582 = arith.mulf %553, %581 : vector<2x32xf32>
    %cst_69 = arith.constant 1.000000e+00 : f32
    %583 = vector.broadcast %cst_69 : f32 to vector<2x32xf32>
    %584 = arith.addf %583, %582 : vector<2x32xf32>
    %585 = arith.mulf %546, %584 : vector<2x32xf32>
    %586 = arith.truncf %585 : vector<2x32xf32> to vector<2x32xbf16>
    %cst_70 = arith.constant dense<0.000000e+00> : vector<2x32xf32>
    %587 = tpu.matmul %586, %4, %cst_70 {dimension_numbers = #tpu.dot_dimension_numbers<[1], [0], [0], [1], [0, 0, 1, 1], [], []>} : vector<2x32xbf16>, vector<32x32xbf16>, vector<2x32xf32> -> vector<2x32xf32>
    %588 = vector.broadcast %16 : vector<1x32xf32> to vector<2x32xf32>
    %589 = arith.addf %587, %588 : vector<2x32xf32>
    %590 = vector.extract_strided_slice %589 {offsets = [0, 0], sizes = [2, 16], strides = [1, 1]} : vector<2x32xf32> to vector<2x16xf32>
    %c0_71 = arith.constant 0 : index
    %c0_72 = arith.constant 0 : index
    %591 = vector.load %arg3[%c0_71, %c0_72] : memref<2x16xf32, #tpu.memory_space<vmem>>, vector<2x16xf32>
    tpu.vector_store %arg3[%c0_71, %c0_72], %590 {strides = array<i32>} : memref<2x16xf32, #tpu.memory_space<vmem>>, vector<2x16xf32>,
    %592 = vector.extract_strided_slice %589 {offsets = [0, 16], sizes = [2, 16], strides = [1, 1]} : vector<2x32xf32> to vector<2x16xf32>
    %c0_73 = arith.constant 0 : index
    %c0_74 = arith.constant 0 : index
    %593 = vector.load %arg4[%c0_73, %c0_74] : memref<2x16xf32, #tpu.memory_space<vmem>>, vector<2x16xf32>
    tpu.vector_store %arg4[%c0_73, %c0_74], %592 {strides = array<i32>} : memref<2x16xf32, #tpu.memory_space<vmem>>, vector<2x16xf32>,
    return
  }
}

</mosaic_0001>

<llo_original>
// kernel: lightweight_encoder_lstm.1
$region0: #{lightweight_encoder_lstm.1}
  #allocation0 [shape = 'u32[]', space=smem, size = 0x4, offset = 0x4, fixed_abs, tag = 'smem constant byte address 0x4 - core index']
  #allocation1 [shape = 'u32[144,128]{1,0:T(1,128)}', space=vmem, size = 0x12000, scoped, tag = 'internal scratch']
  %s0 = inlined_call_operand.vmem [shape: f32[16,12], index: 0, kind: input, shape index: {}]
  %s1 = inlined_call_operand.hbm [shape: bf16[160,256], index: 1, kind: input, shape index: {}]
  %s2 = inlined_call_operand.vmem [shape: f32[16,256], index: 2, kind: input, shape index: {}]
  %s3 = inlined_call_operand.hbm [shape: f32[2,16], index: 3, kind: output, shape index: {0}]
  %s4 = inlined_call_operand.hbm [shape: f32[2,16], index: 4, kind: output, shape index: {1}]
  %5 = xla_tuple %s3, %s4
  %s6 = sld [smem:[#allocation0]]
  $region34: #{lightweight_encoder_lstm.1} parent=0
    _
  %s8 = ssub.s32 1, %s6
  %s9 = scalar_select 0, %s8, %s6
  $region1: #{lightweight_encoder_lstm.1} parent=0
    #allocation2 [shape = 'u8[81920]{0}', space=vmem, size = 0x14000, scoped, tag = 'input window, operand 1, single buffered']
    #allocation3 [shape = 's32[1]{0}', space=sflag, size = 0x4, scoped, tag = 'scoped memory for lightweight_encoder_lstm.1']
    #allocation4 [shape = 's32[1]{0}', space=sflag, size = 0x4, scoped, tag = 'scoped memory for lightweight_encoder_lstm.1']
    #allocation5 [shape = 'u8[1024]{0}', space=vmem, size = 0x400, scoped, tag = 'output window, operand 0, single buffered']
    #allocation6 [shape = 'u8[1024]{0}', space=vmem, size = 0x400, scoped, tag = 'output window, operand 1, single buffered']
    #allocation7 [shape = 's32[1]{0}', space=sflag, size = 0x4, scoped, tag = 'scoped memory for lightweight_encoder_lstm.1']
    %10 = vsyncpa [#allocation3], 0
    %11 = vsyncpa [#allocation4], 0
    %12 = vsyncpa [#allocation7], 0
    // Predicated region
    $region2: #{lightweight_encoder_lstm.1} parent=1 // pred_check
      _
    $region3: #{lightweight_encoder_lstm.1} parent=1 // pred_check_branch
      %14 = sbr.rel (0) target = $region5
    $region4: #{lightweight_encoder_lstm.1} parent=1 // pred_region
      _
    $region5: #{lightweight_encoder_lstm.1} parent=1 // pred_fallthru
      _
    // Predicated region
    $region6: #{lightweight_encoder_lstm.1} parent=1 // pred_check
      _
    $region7: #{lightweight_encoder_lstm.1} parent=1 // pred_check_branch
      %16 = sbr.rel (0) target = $region9
    $region8: #{lightweight_encoder_lstm.1} parent=1 // pred_region
      %s18 = ssub.s32 2560, 2560
      %19 = vsyncadd [#allocation3], %s18
      %s20 = sshll.u32 [#allocation2], 4
      %s21 = int_to_ptr.vmem [resolvable:$true] %s20
      %26 = dma.hbm_to_vmem [thread:$0]  %s1, 2560, %s21, [#allocation3], 128, 128, 8
    $region9: #{lightweight_encoder_lstm.1} parent=1 // pred_fallthru
      _
    // Predicated region
    $region10: #{lightweight_encoder_lstm.1} parent=1 // pred_check
      _
    $region11: #{lightweight_encoder_lstm.1} parent=1 // pred_check_branch
      %28 = sbr.rel (0) target = $region13
    $region12: #{lightweight_encoder_lstm.1} parent=1 // pred_region
      _
    $region13: #{lightweight_encoder_lstm.1} parent=1 // pred_fallthru
      _
    // Predicated region
    $region14: #{lightweight_encoder_lstm.1} parent=1 // pred_check
      _
    $region15: #{lightweight_encoder_lstm.1} parent=1 // pred_check_branch
      %30 = sbr.rel (0) target = $region17
    $region16: #{lightweight_encoder_lstm.1} parent=1 // pred_region
      %31 = dma.done [#allocation3], 2560
    $region17: #{lightweight_encoder_lstm.1} parent=1 // pred_fallthru
      _
    %v33 = vld [vmem:[#allocation2] sm:$0xff]
    %v34 = vld [vmem:[#allocation2 + $0x8] sm:$0xff]
    %v35 = vld [vmem:[#allocation2 + $0x10] sm:$0xff]
    %v36 = vld [vmem:[#allocation2 + $0x18] sm:$0xff]
    %v37 = vld [vmem:[#allocation2 + $0x20] sm:$0xff]
    %v38 = vld [vmem:[#allocation2 + $0x28] sm:$0xff]
    %v39 = vld [vmem:[#allocation2 + $0x30] sm:$0xff]
    %v40 = vld [vmem:[#allocation2 + $0x38] sm:$0xff]
    %v41 = vld [vmem:[#allocation2 + $0x40] sm:$0xff]
    %v42 = vld [vmem:[#allocation2 + $0x48] sm:$0xff]
    %v43 = vld [vmem:[#allocation2 + $0x50] sm:$0xff]
    %v44 = vld [vmem:[#allocation2 + $0x58] sm:$0xff]
    %v45 = vld [vmem:[#allocation2 + $0x60] sm:$0xff]
    %v46 = vld [vmem:[#allocation2 + $0x68] sm:$0xff]
    %v47 = vld [vmem:[#allocation2 + $0x70] sm:$0xff]
    %v48 = vld [vmem:[#allocation2 + $0x78] sm:$0xff]
    %v49 = vld [vmem:[#allocation2 + $0x44] sm:$0xf]
    %v50 = vld [vmem:[#allocation2 + $0x4c] sm:$0xf]
    %v51 = vld [vmem:[#allocation2 + $0x54] sm:$0xf]
    %v52 = vld [vmem:[#allocation2 + $0x5c] sm:$0xf]
    %v53 = vld [vmem:[#allocation2 + $0x64] sm:$0xf]
    %v54 = vld [vmem:[#allocation2 + $0x6c] sm:$0xf]
    %v55 = vld [vmem:[#allocation2 + $0x74] sm:$0xf]
    %v56 = vld [vmem:[#allocation2 + $0x7c] sm:$0xf]
    %v57 = vld [vmem:[#allocation2 + $0x80] sm:$0xf]
    %v58 = vld [vmem:[#allocation2 + $0x88] sm:$0x3]
    %v59 = vld [vmem:[#allocation2 + $0x88] sm:$0xf]
    %v60 = vld [vmem:[#allocation2 + $0x90] sm:$0xf]
    %v61 = vld [vmem:[#allocation2 + $0x98] sm:$0xf]
    %v62 = vld [vmem:[%s2] ss:$8 sm:$0x3]
    %v63 = vld [vmem:[%s2 + $0x8] ss:$0 sm:$0xff]
    %v64 = vld [vmem:[%s2 + $0x1] ss:$0 sm:$0xff]
    %v65 = vld [vmem:[%s2 + $0x2] ss:$0 sm:$0xff]
    %v66 = vld [vmem:[%s2 + $0x3] ss:$0 sm:$0xff]
    %v67 = vld [vmem:[%s2 + $0x4] ss:$0 sm:$0xff]
    %v68 = vld [vmem:[%s2 + $0x5] ss:$0 sm:$0xff]
    %v69 = vld [vmem:[%s2 + $0x6] ss:$0 sm:$0xff]
    %v70 = vld [vmem:[%s2 + $0x7] ss:$0 sm:$0xff]
    %v71 = vld [vmem:[%s2 + $0x10] ss:$0 sm:$0xff]
    %v72 = vld [vmem:[%s2 + $0x11] ss:$0 sm:$0xff]
    %v73 = vld [vmem:[%s2 + $0x12] ss:$0 sm:$0xff]
    %v74 = vld [vmem:[%s0] sm:$0xff]
    %v75 = vld [vmem:[%s0 + $0x8] sm:$0xff]
    %v76 = vpack.c.bf16 %v75, %v74
    %v79 = vunpack.c.l.b16 %v57
    %v80 = vunpack.c.l.b16 %v58
    %v81 = vpack.c.b16 %v80, %v79
    %vm82 = vcmask 97280
    %v84 = vsel %vm82, %v76, 0
    %vm86 = vcmask 1045504
    %v88 = vsel %vm86, %v81, 0
    %90 = vmatprep.subr.bf16.mxu0 0
    %91 = vmatpush1.bf16.msra.mxu0 %v88
    %92 = vmatprep.subr.bf16.mxu0 0
    %93 = vmatpush1.bf16.msra.mxu0 0
    %94 = vmatprep.subr.bf16.mxu0 0
    %95 = vmatpush1.bf16.msra.mxu0 0
    %96 = vmatprep.subr.bf16.mxu0 0
    %97 = vmatpush1.bf16.msra.mxu0 0
    %98 = vmatprep.subr.bf16.mxu0 0
    %99 = vmatpush1.bf16.msra.mxu0 0
    %100 = vmatprep.subr.bf16.mxu0 0
    %101 = vmatpush1.bf16.msra.mxu0 0
    %102 = vmatprep.subr.bf16.mxu0 0
    %103 = vmatpush1.bf16.msra.mxu0 0
    %104 = vmatprep.subr.bf16.mxu0 0
    %105 = vmatpush1.bf16.msra.mxu0 0
    %106 = vmatprep.subr.bf16.mxu0 0
    %107 = vmatpush1.bf16.msra.mxu0 0
    %108 = vmatprep.subr.bf16.mxu0 0
    %109 = vmatpush1.bf16.msra.mxu0 0
    %110 = vmatprep.subr.bf16.mxu0 0
    %111 = vmatpush1.bf16.msra.mxu0 0
    %112 = vmatprep.subr.bf16.mxu0 0
    %113 = vmatpush1.bf16.msra.mxu0 0
    %114 = vmatprep.subr.bf16.mxu0 0
    %115 = vmatpush1.bf16.msra.mxu0 0
    %116 = vmatprep.subr.bf16.mxu0 0
    %117 = vmatpush1.bf16.msra.mxu0 0
    %118 = vmatprep.subr.bf16.mxu0 0
    %119 = vmatpush1.bf16.msra.mxu0 0
    %120 = vmatprep.subr.bf16.mxu0 0
    %121 = vmatpush1.bf16.msra.mxu0 0
    %122 = vmatprep.mubr.bf16.mxu0 0
    %123 = vmatmul.mubr.bf16.gmra.mrb[0].mxu0 %v84
    %v124 = vpop.f32.mrb[0].mxu0
    %v125 = vadd.f32 %v66, %v124
    %v126 = vpop.f32.mrb[0].mxu0
    %v127 = vpop.f32.mrb[0].mxu0
    %v128 = vadd.f32 %v66, %v127
    %v129 = vpop.f32.mrb[0].mxu0
    %130 = vdwg.mxu0
    %vm131 = vcmask 261120
    %v132 = vsel %vm131, %v125, 0.0
    %133 = vadd.xlane.f32.xlu0 %v132
    %v134 = vpop.xlane.xlu0 %133
    %v135 = vsel %vm131, %v128, 0.0
    %136 = vadd.xlane.f32.xlu0 %v135
    %v137 = vpop.xlane.xlu0 %136
    %v138 = vrcp.pop 32.0
    %v139 = vmul.f32 %v134, %v138
    %v140 = vmul.f32 %v137, %v138
    %v141 = vsub.f32 %v125, %v139
    %v142 = vsub.f32 %v128, %v140
    %v143 = vmul.f32 %v141, %v141
    %v144 = vmul.f32 %v142, %v142
    %v145 = vsel %vm131, %v143, 0.0
    %146 = vadd.xlane.f32.xlu0 %v145
    %v147 = vpop.xlane.xlu0 %146
    %v148 = vsel %vm131, %v144, 0.0
    %149 = vadd.xlane.f32.xlu0 %v148
    %v150 = vpop.xlane.xlu0 %149
    %v151 = vmul.f32 %v147, %v138
    %v152 = vmul.f32 %v150, %v138
    %v153 = vadd.f32 %v151, 1e-05
    %v154 = vadd.f32 %v152, 1e-05
    %v155 = vrsqrt.pop %v153
    %v156 = vrsqrt.pop %v154
    %v157 = vmul.f32 %v141, %v155
    %v158 = vmul.f32 %v142, %v156
    %v159 = vmul.f32 %v157, %v67
    %v160 = vmul.f32 %v158, %v67
    %v161 = vadd.f32 %v159, %v68
    %v162 = vadd.f32 %v160, %v68
    %v164 = vrot.slane %v162, 7
    %vm166 = vcmask 1040384
    %v167 = vsel %vm166, %v161, %v164
    %v168 = vsel %vm131, %v167, 0.0
    %vm169 = vcmask 523264
    %v170 = vsel %vm169, %v168, 0.0
    %vm171 = vcmask 785408
    %v172 = vsel %vm171, %v170, 0.0
    %v173 = vpack.c.bf16 %v172, %v172
    %v175 = vlaneseq
    %v176 = vshrl.u32 %v175, 7
    %v177 = vsub.s32 0, %v176
    %v178 = vrot.slane %v62, %v177
    %v179 = vlaneseq
    %v180 = vshrl.u32 %v179, 7
    %v181 = vsub.s32 1, %v180
    %v182 = vrot.slane %v62, %v181
    %v201 = vunpack.c.l.b16 %v33
    %v202 = vunpack.c.h.b16 %v33
    %v203 = vunpack.c.l.b16 %v34
    %v204 = vunpack.c.h.b16 %v34
    %v205 = vunpack.c.l.b16 %v35
    %v206 = vunpack.c.h.b16 %v35
    %v207 = vunpack.c.l.b16 %v36
    %v208 = vunpack.c.h.b16 %v36
    %v209 = vunpack.c.l.b16 %v37
    %v210 = vunpack.c.h.b16 %v37
    %v211 = vunpack.c.l.b16 %v38
    %v212 = vunpack.c.h.b16 %v38
    %v213 = vunpack.c.l.b16 %v39
    %v214 = vunpack.c.h.b16 %v39
    %v215 = vunpack.c.l.b16 %v40
    %v216 = vunpack.c.h.b16 %v40
    %v217 = vunpack.c.l.b16 %v41
    %v218 = vunpack.c.h.b16 %v41
    %v219 = vunpack.c.l.b16 %v42
    %v220 = vunpack.c.h.b16 %v42
    %v221 = vunpack.c.l.b16 %v43
    %v222 = vunpack.c.h.b16 %v43
    %v223 = vunpack.c.l.b16 %v44
    %v224 = vunpack.c.h.b16 %v44
    %v225 = vunpack.c.l.b16 %v45
    %v226 = vunpack.c.h.b16 %v45
    %v227 = vunpack.c.l.b16 %v46
    %v228 = vunpack.c.h.b16 %v46
    %v229 = vunpack.c.l.b16 %v47
    %v230 = vunpack.c.h.b16 %v47
    %v231 = vunpack.c.l.b16 %v48
    %v232 = vunpack.c.h.b16 %v48
    %v233 = vpack.c.b16 %v203, %v201
    %v234 = vpack.c.b16 %v204, %v202
    %v235 = vpack.c.b16 %v207, %v205
    %v236 = vpack.c.b16 %v208, %v206
    %v237 = vpack.c.b16 %v211, %v209
    %v238 = vpack.c.b16 %v212, %v210
    %v239 = vpack.c.b16 %v215, %v213
    %v240 = vpack.c.b16 %v216, %v214
    %v241 = vpack.c.b16 %v219, %v217
    %v242 = vpack.c.b16 %v220, %v218
    %v243 = vpack.c.b16 %v223, %v221
    %v244 = vpack.c.b16 %v224, %v222
    %v245 = vpack.c.b16 %v227, %v225
    %v246 = vpack.c.b16 %v228, %v226
    %v247 = vpack.c.b16 %v231, %v229
    %v248 = vpack.c.b16 %v232, %v230
    %265 = vmatprep.subr.bf16.mxu0 %v234
    %266 = vmatpush1.bf16.msra.mxu0 %v233
    %267 = vmatprep.subr.bf16.mxu0 %v236
    %268 = vmatpush1.bf16.msra.mxu0 %v235
    %269 = vmatprep.subr.bf16.mxu0 %v238
    %270 = vmatpush1.bf16.msra.mxu0 %v237
    %271 = vmatprep.subr.bf16.mxu0 %v240
    %272 = vmatpush1.bf16.msra.mxu0 %v239
    %273 = vmatprep.subr.bf16.mxu0 %v242
    %274 = vmatpush1.bf16.msra.mxu0 %v241
    %275 = vmatprep.subr.bf16.mxu0 %v244
    %276 = vmatpush1.bf16.msra.mxu0 %v243
    %277 = vmatprep.subr.bf16.mxu0 %v246
    %278 = vmatpush1.bf16.msra.mxu0 %v245
    %279 = vmatprep.subr.bf16.mxu0 %v248
    %280 = vmatpush1.bf16.msra.mxu0 %v247
    %281 = vmatprep.subr.bf16.mxu0 0
    %282 = vmatpush1.bf16.msra.mxu0 0
    %283 = vmatprep.subr.bf16.mxu0 0
    %284 = vmatpush1.bf16.msra.mxu0 0
    %285 = vmatprep.subr.bf16.mxu0 0
    %286 = vmatpush1.bf16.msra.mxu0 0
    %287 = vmatprep.subr.bf16.mxu0 0
    %288 = vmatpush1.bf16.msra.mxu0 0
    %289 = vmatprep.subr.bf16.mxu0 0
    %290 = vmatpush1.bf16.msra.mxu0 0
    %291 = vmatprep.subr.bf16.mxu0 0
    %292 = vmatpush1.bf16.msra.mxu0 0
    %293 = vmatprep.subr.bf16.mxu0 0
    %294 = vmatpush1.bf16.msra.mxu0 0
    %295 = vmatprep.subr.bf16.mxu0 0
    %296 = vmatpush1.bf16.msra.mxu0 0
    %297 = vmatprep.mubr.bf16.mxu0 0
    %298 = vmatmul.mubr.bf16.gmra.mrb[0].mxu0 %v173
    %v299 = vpop.f32.mrb[0].mxu0
    %v300 = vadd.f32 %v178, %v299
    %v301 = vpop.f32.mrb[0].mxu0
    %v302 = vpop.f32.mrb[0].mxu0
    %v303 = vpop.f32.mrb[0].mxu0
    %304 = vdwg.mxu0
    %v305 = vmul.f32 %v300, %v64
    %v306 = vtanh.pop %v305
    %v307 = vmul.f32 %v64, %v306
    %v308 = vadd.f32 %v307, %v65
    %v309 = vmul.f32 %v308, 0.0
    %311 = vrot.lane.b32.xlu0 %v308, 64
    %v312 = vpop.permute.xlu0 %311
    %v314 = vmul.f32 %v308, %v312
    %316 = vrot.lane.b32.xlu0 %v314, 32
    %v317 = vpop.permute.xlu0 %316
    %v319 = vadd.f32 %v309, %v317
    %v320 = vtanh.pop %v319
    %322 = vrot.lane.b32.xlu0 %v320, 64
    %v323 = vpop.permute.xlu0 %322
    %v325 = vmul.f32 %v308, %v323
    %v327 = vrot.slane %v161, 1
    %v329 = vsel %vm166, %v327, %v162
    %331 = vrot.lane.b32.xlu0 %v325, 64
    %v332 = vpop.permute.xlu0 %331
    %334 = vrot.lane.b32.xlu0 %v325, 96
    %v335 = vpop.permute.xlu0 %334
    %v337 = vsel %vm131, %v329, %v332
    %v338 = vsel %vm169, %v337, %v335
    %v339 = vsel %vm171, %v338, 0.0
    %v340 = vpack.c.bf16 %v339, %v339
    %341 = vmatprep.subr.bf16.mxu0 %v234
    %342 = vmatpush1.bf16.msra.mxu0 %v233
    %343 = vmatprep.subr.bf16.mxu0 %v236
    %344 = vmatpush1.bf16.msra.mxu0 %v235
    %345 = vmatprep.subr.bf16.mxu0 %v238
    %346 = vmatpush1.bf16.msra.mxu0 %v237
    %347 = vmatprep.subr.bf16.mxu0 %v240
    %348 = vmatpush1.bf16.msra.mxu0 %v239
    %349 = vmatprep.subr.bf16.mxu0 %v242
    %350 = vmatpush1.bf16.msra.mxu0 %v241
    %351 = vmatprep.subr.bf16.mxu0 %v244
    %352 = vmatpush1.bf16.msra.mxu0 %v243
    %353 = vmatprep.subr.bf16.mxu0 %v246
    %354 = vmatpush1.bf16.msra.mxu0 %v245
    %355 = vmatprep.subr.bf16.mxu0 %v248
    %356 = vmatpush1.bf16.msra.mxu0 %v247
    %357 = vmatprep.subr.bf16.mxu0 0
    %358 = vmatpush1.bf16.msra.mxu0 0
    %359 = vmatprep.subr.bf16.mxu0 0
    %360 = vmatpush1.bf16.msra.mxu0 0
    %361 = vmatprep.subr.bf16.mxu0 0
    %362 = vmatpush1.bf16.msra.mxu0 0
    %363 = vmatprep.subr.bf16.mxu0 0
    %364 = vmatpush1.bf16.msra.mxu0 0
    %365 = vmatprep.subr.bf16.mxu0 0
    %366 = vmatpush1.bf16.msra.mxu0 0
    %367 = vmatprep.subr.bf16.mxu0 0
    %368 = vmatpush1.bf16.msra.mxu0 0
    %369 = vmatprep.subr.bf16.mxu0 0
    %370 = vmatpush1.bf16.msra.mxu0 0
    %371 = vmatprep.subr.bf16.mxu0 0
    %372 = vmatpush1.bf16.msra.mxu0 0
    %373 = vmatprep.mubr.bf16.mxu0 0
    %374 = vmatmul.mubr.bf16.gmra.mrb[0].mxu0 %v340
    %v375 = vpop.f32.mrb[0].mxu0
    %v376 = vadd.f32 %v178, %v375
    %v377 = vpop.f32.mrb[0].mxu0
    %v378 = vadd.f32 %v182, %v377
    %v379 = vpop.f32.mrb[0].mxu0
    %v380 = vpop.f32.mrb[0].mxu0
    %381 = vdwg.mxu0
    %v382 = vmul.f32 %v378, %v64
    %v383 = vtanh.pop %v382
    %v384 = vmul.f32 %v64, %v383
    %v385 = vadd.f32 %v384, %v65
    %v386 = vmul.f32 %v385, 0.0
    %388 = vrot.lane.b32.xlu0 %v385, 64
    %v389 = vpop.permute.xlu0 %388
    %v391 = vmul.f32 %v385, %v389
    %393 = vrot.lane.b32.xlu0 %v391, 32
    %v394 = vpop.permute.xlu0 %393
    %v396 = vadd.f32 %v386, %v394
    %v397 = vtanh.pop %v396
    %399 = vrot.lane.b32.xlu0 %v397, 64
    %v400 = vpop.permute.xlu0 %399
    %v402 = vmul.f32 %v385, %v400
    %404 = vrot.lane.b32.xlu0 %v69, 96
    %v405 = vpop.permute.xlu0 %404
    %v407 = vmul.f32 %v402, %v405
    %409 = vrot.lane.b32.xlu0 %v407, 32
    %v410 = vpop.permute.xlu0 %409
    %vm412 = vcmask 254976
    %v413 = vsel %vm412, %v410, 0.0
    %414 = vadd.xlane.f32.xlu0 %v413
    %v415 = vpop.xlane.xlu0 %414
    %v416 = vmax.f32 %v415, -1e+30
    %v417 = vsub.f32 -1e+30, %v416
    %v418 = vmul.f32 %v417, 1.442695
    %v419 = vpow.pop %v418
    %v420 = vsub.f32 %v415, %v416
    %v421 = vmul.f32 %v420, 1.442695
    %v422 = vpow.pop %v421
    %v423 = vmul.f32 %v419, 0.0
    %v424 = vadd.f32 %v423, %v422
    %v425 = vmul.f32 %v422, %v402
    %v426 = vadd.f32 %v423, %v425
    %v427 = vmul.f32 %v376, %v64
    %v428 = vtanh.pop %v427
    %v429 = vmul.f32 %v64, %v428
    %v430 = vadd.f32 %v429, %v65
    %v431 = vmul.f32 %v430, %v319
    %433 = vrot.lane.b32.xlu0 %v430, 64
    %v434 = vpop.permute.xlu0 %433
    %v436 = vmul.f32 %v430, %v434
    %438 = vrot.lane.b32.xlu0 %v436, 32
    %v439 = vpop.permute.xlu0 %438
    %v441 = vadd.f32 %v431, %v439
    %v442 = vtanh.pop %v441
    %444 = vrot.lane.b32.xlu0 %v442, 64
    %v445 = vpop.permute.xlu0 %444
    %v447 = vmul.f32 %v430, %v445
    %v448 = vrot.slane %v161, 2
    %v450 = vrot.slane %v162, 1
    %v452 = vsel %vm166, %v448, %v450
    %454 = vrot.lane.b32.xlu0 %v447, 64
    %v455 = vpop.permute.xlu0 %454
    %457 = vrot.lane.b32.xlu0 %v447, 96
    %v458 = vpop.permute.xlu0 %457
    %v460 = vsel %vm131, %v452, %v455
    %v461 = vsel %vm169, %v460, %v458
    %v462 = vsel %vm171, %v461, %v402
    %v463 = vpack.c.bf16 %v462, %v462
    %464 = vmatprep.subr.bf16.mxu0 %v234
    %465 = vmatpush1.bf16.msra.mxu0 %v233
    %466 = vmatprep.subr.bf16.mxu0 %v236
    %467 = vmatpush1.bf16.msra.mxu0 %v235
    %468 = vmatprep.subr.bf16.mxu0 %v238
    %469 = vmatpush1.bf16.msra.mxu0 %v237
    %470 = vmatprep.subr.bf16.mxu0 %v240
    %471 = vmatpush1.bf16.msra.mxu0 %v239
    %472 = vmatprep.subr.bf16.mxu0 %v242
    %473 = vmatpush1.bf16.msra.mxu0 %v241
    %474 = vmatprep.subr.bf16.mxu0 %v244
    %475 = vmatpush1.bf16.msra.mxu0 %v243
    %476 = vmatprep.subr.bf16.mxu0 %v246
    %477 = vmatpush1.bf16.msra.mxu0 %v245
    %478 = vmatprep.subr.bf16.mxu0 %v248
    %479 = vmatpush1.bf16.msra.mxu0 %v247
    %480 = vmatprep.subr.bf16.mxu0 0
    %481 = vmatpush1.bf16.msra.mxu0 0
    %482 = vmatprep.subr.bf16.mxu0 0
    %483 = vmatpush1.bf16.msra.mxu0 0
    %484 = vmatprep.subr.bf16.mxu0 0
    %485 = vmatpush1.bf16.msra.mxu0 0
    %486 = vmatprep.subr.bf16.mxu0 0
    %487 = vmatpush1.bf16.msra.mxu0 0
    %488 = vmatprep.subr.bf16.mxu0 0
    %489 = vmatpush1.bf16.msra.mxu0 0
    %490 = vmatprep.subr.bf16.mxu0 0
    %491 = vmatpush1.bf16.msra.mxu0 0
    %492 = vmatprep.subr.bf16.mxu0 0
    %493 = vmatpush1.bf16.msra.mxu0 0
    %494 = vmatprep.subr.bf16.mxu0 0
    %495 = vmatpush1.bf16.msra.mxu0 0
    %496 = vmatprep.mubr.bf16.mxu0 0
    %497 = vmatmul.mubr.bf16.gmra.mrb[0].mxu0 %v463
    %v498 = vpop.f32.mrb[0].mxu0
    %v499 = vadd.f32 %v178, %v498
    %v500 = vpop.f32.mrb[0].mxu0
    %v501 = vadd.f32 %v182, %v500
    %v502 = vpop.f32.mrb[0].mxu0
    %v503 = vpop.f32.mrb[0].mxu0
    %504 = vdwg.mxu0
    %v505 = vmul.f32 %v501, %v64
    %v506 = vtanh.pop %v505
    %v507 = vmul.f32 %v64, %v506
    %v508 = vadd.f32 %v507, %v65
    %v509 = vmul.f32 %v508, %v396
    %511 = vrot.lane.b32.xlu0 %v508, 64
    %v512 = vpop.permute.xlu0 %511
    %v514 = vmul.f32 %v508, %v512
    %516 = vrot.lane.b32.xlu0 %v514, 32
    %v517 = vpop.permute.xlu0 %516
    %v519 = vadd.f32 %v509, %v517
    %v520 = vtanh.pop %v519
    %522 = vrot.lane.b32.xlu0 %v520, 64
    %v523 = vpop.permute.xlu0 %522
    %v525 = vmul.f32 %v508, %v523
    %v526 = vmul.f32 %v525, %v405
    %528 = vrot.lane.b32.xlu0 %v526, 32
    %v529 = vpop.permute.xlu0 %528
    %v531 = vsel %vm412, %v529, 0.0
    %532 = vadd.xlane.f32.xlu0 %v531
    %v533 = vpop.xlane.xlu0 %532
    %v534 = vmax.f32 %v416, %v533
    %v535 = vsub.f32 %v416, %v534
    %v536 = vmul.f32 %v535, 1.442695
    %v537 = vpow.pop %v536
    %v538 = vsub.f32 %v533, %v534
    %v539 = vmul.f32 %v538, 1.442695
    %v540 = vpow.pop %v539
    %v541 = vmul.f32 %v537, %v424
    %v542 = vadd.f32 %v541, %v540
    %v543 = vmul.f32 %v537, %v426
    %v544 = vmul.f32 %v540, %v525
    %v545 = vadd.f32 %v543, %v544
    %v546 = vmul.f32 %v499, %v64
    %v547 = vtanh.pop %v546
    %v548 = vmul.f32 %v64, %v547
    %v549 = vadd.f32 %v548, %v65
    %v550 = vmul.f32 %v549, %v441
    %552 = vrot.lane.b32.xlu0 %v549, 64
    %v553 = vpop.permute.xlu0 %552
    %v555 = vmul.f32 %v549, %v553
    %557 = vrot.lane.b32.xlu0 %v555, 32
    %v558 = vpop.permute.xlu0 %557
    %v560 = vadd.f32 %v550, %v558
    %v561 = vtanh.pop %v560
    %563 = vrot.lane.b32.xlu0 %v561, 64
    %v564 = vpop.permute.xlu0 %563
    %v566 = vmul.f32 %v549, %v564
    %v567 = vrot.slane %v161, 3
    %v569 = vrot.slane %v162, 2
    %v571 = vsel %vm166, %v567, %v569
    %573 = vrot.lane.b32.xlu0 %v566, 64
    %v574 = vpop.permute.xlu0 %573
    %576 = vrot.lane.b32.xlu0 %v566, 96
    %v577 = vpop.permute.xlu0 %576
    %v579 = vsel %vm131, %v571, %v574
    %v580 = vsel %vm169, %v579, %v577
    %v581 = vsel %vm171, %v580, %v525
    %v582 = vpack.c.bf16 %v581, %v581
    %583 = vmatprep.subr.bf16.mxu0 %v234
    %584 = vmatpush1.bf16.msra.mxu0 %v233
    %585 = vmatprep.subr.bf16.mxu0 %v236
    %586 = vmatpush1.bf16.msra.mxu0 %v235
    %587 = vmatprep.subr.bf16.mxu0 %v238
    %588 = vmatpush1.bf16.msra.mxu0 %v237
    %589 = vmatprep.subr.bf16.mxu0 %v240
    %590 = vmatpush1.bf16.msra.mxu0 %v239
    %591 = vmatprep.subr.bf16.mxu0 %v242
    %592 = vmatpush1.bf16.msra.mxu0 %v241
    %593 = vmatprep.subr.bf16.mxu0 %v244
    %594 = vmatpush1.bf16.msra.mxu0 %v243
    %595 = vmatprep.subr.bf16.mxu0 %v246
    %596 = vmatpush1.bf16.msra.mxu0 %v245
    %597 = vmatprep.subr.bf16.mxu0 %v248
    %598 = vmatpush1.bf16.msra.mxu0 %v247
    %599 = vmatprep.subr.bf16.mxu0 0
    %600 = vmatpush1.bf16.msra.mxu0 0
    %601 = vmatprep.subr.bf16.mxu0 0
    %602 = vmatpush1.bf16.msra.mxu0 0
    %603 = vmatprep.subr.bf16.mxu0 0
    %604 = vmatpush1.bf16.msra.mxu0 0
    %605 = vmatprep.subr.bf16.mxu0 0
    %606 = vmatpush1.bf16.msra.mxu0 0
    %607 = vmatprep.subr.bf16.mxu0 0
    %608 = vmatpush1.bf16.msra.mxu0 0
    %609 = vmatprep.subr.bf16.mxu0 0
    %610 = vmatpush1.bf16.msra.mxu0 0
    %611 = vmatprep.subr.bf16.mxu0 0
    %612 = vmatpush1.bf16.msra.mxu0 0
    %613 = vmatprep.subr.bf16.mxu0 0
    %614 = vmatpush1.bf16.msra.mxu0 0
    %615 = vmatprep.mubr.bf16.mxu0 0
    %616 = vmatmul.mubr.bf16.gmra.mrb[0].mxu0 %v582
    %v617 = vpop.f32.mrb[0].mxu0
    %v618 = vadd.f32 %v178, %v617
    %v619 = vpop.f32.mrb[0].mxu0
    %v620 = vadd.f32 %v182, %v619
    %v621 = vpop.f32.mrb[0].mxu0
    %v622 = vpop.f32.mrb[0].mxu0
    %623 = vdwg.mxu0
    %v624 = vmul.f32 %v620, %v64
    %v625 = vtanh.pop %v624
    %v626 = vmul.f32 %v64, %v625
    %v627 = vadd.f32 %v626, %v65
    %v628 = vmul.f32 %v627, %v519
    %630 = vrot.lane.b32.xlu0 %v627, 64
    %v631 = vpop.permute.xlu0 %630
    %v633 = vmul.f32 %v627, %v631
    %635 = vrot.lane.b32.xlu0 %v633, 32
    %v636 = vpop.permute.xlu0 %635
    %v638 = vadd.f32 %v628, %v636
    %v639 = vtanh.pop %v638
    %641 = vrot.lane.b32.xlu0 %v639, 64
    %v642 = vpop.permute.xlu0 %641
    %v644 = vmul.f32 %v627, %v642
    %v645 = vmul.f32 %v644, %v405
    %647 = vrot.lane.b32.xlu0 %v645, 32
    %v648 = vpop.permute.xlu0 %647
    %v650 = vsel %vm412, %v648, 0.0
    %651 = vadd.xlane.f32.xlu0 %v650
    %v652 = vpop.xlane.xlu0 %651
    %v653 = vmax.f32 %v534, %v652
    %v654 = vsub.f32 %v534, %v653
    %v655 = vmul.f32 %v654, 1.442695
    %v656 = vpow.pop %v655
    %v657 = vsub.f32 %v652, %v653
    %v658 = vmul.f32 %v657, 1.442695
    %v659 = vpow.pop %v658
    %v660 = vmul.f32 %v656, %v542
    %v661 = vadd.f32 %v660, %v659
    %v662 = vmul.f32 %v656, %v545
    %v663 = vmul.f32 %v659, %v644
    %v664 = vadd.f32 %v662, %v663
    %v665 = vmul.f32 %v618, %v64
    %v666 = vtanh.pop %v665
    %v667 = vmul.f32 %v64, %v666
    %v668 = vadd.f32 %v667, %v65
    %v669 = vmul.f32 %v668, %v560
    %671 = vrot.lane.b32.xlu0 %v668, 64
    %v672 = vpop.permute.xlu0 %671
    %v674 = vmul.f32 %v668, %v672
    %676 = vrot.lane.b32.xlu0 %v674, 32
    %v677 = vpop.permute.xlu0 %676
    %v679 = vadd.f32 %v669, %v677
    %v680 = vtanh.pop %v679
    %682 = vrot.lane.b32.xlu0 %v680, 64
    %v683 = vpop.permute.xlu0 %682
    %v685 = vmul.f32 %v668, %v683
    %v686 = vrot.slane %v161, 4
    %v688 = vrot.slane %v162, 3
    %v690 = vsel %vm166, %v686, %v688
    %692 = vrot.lane.b32.xlu0 %v685, 64
    %v693 = vpop.permute.xlu0 %692
    %695 = vrot.lane.b32.xlu0 %v685, 96
    %v696 = vpop.permute.xlu0 %695
    %v698 = vsel %vm131, %v690, %v693
    %v699 = vsel %vm169, %v698, %v696
    %v700 = vsel %vm171, %v699, %v644
    %v701 = vpack.c.bf16 %v700, %v700
    %702 = vmatprep.subr.bf16.mxu0 %v234
    %703 = vmatpush1.bf16.msra.mxu0 %v233
    %704 = vmatprep.subr.bf16.mxu0 %v236
    %705 = vmatpush1.bf16.msra.mxu0 %v235
    %706 = vmatprep.subr.bf16.mxu0 %v238
    %707 = vmatpush1.bf16.msra.mxu0 %v237
    %708 = vmatprep.subr.bf16.mxu0 %v240
    %709 = vmatpush1.bf16.msra.mxu0 %v239
    %710 = vmatprep.subr.bf16.mxu0 %v242
    %711 = vmatpush1.bf16.msra.mxu0 %v241
    %712 = vmatprep.subr.bf16.mxu0 %v244
    %713 = vmatpush1.bf16.msra.mxu0 %v243
    %714 = vmatprep.subr.bf16.mxu0 %v246
    %715 = vmatpush1.bf16.msra.mxu0 %v245
    %716 = vmatprep.subr.bf16.mxu0 %v248
    %717 = vmatpush1.bf16.msra.mxu0 %v247
    %718 = vmatprep.subr.bf16.mxu0 0
    %719 = vmatpush1.bf16.msra.mxu0 0
    %720 = vmatprep.subr.bf16.mxu0 0
    %721 = vmatpush1.bf16.msra.mxu0 0
    %722 = vmatprep.subr.bf16.mxu0 0
    %723 = vmatpush1.bf16.msra.mxu0 0
    %724 = vmatprep.subr.bf16.mxu0 0
    %725 = vmatpush1.bf16.msra.mxu0 0
    %726 = vmatprep.subr.bf16.mxu0 0
    %727 = vmatpush1.bf16.msra.mxu0 0
    %728 = vmatprep.subr.bf16.mxu0 0
    %729 = vmatpush1.bf16.msra.mxu0 0
    %730 = vmatprep.subr.bf16.mxu0 0
    %731 = vmatpush1.bf16.msra.mxu0 0
    %732 = vmatprep.subr.bf16.mxu0 0
    %733 = vmatpush1.bf16.msra.mxu0 0
    %734 = vmatprep.mubr.bf16.mxu0 0
    %735 = vmatmul.mubr.bf16.gmra.mrb[0].mxu0 %v701
    %v736 = vpop.f32.mrb[0].mxu0
    %v737 = vadd.f32 %v178, %v736
    %v738 = vpop.f32.mrb[0].mxu0
    %v739 = vadd.f32 %v182, %v738
    %v740 = vpop.f32.mrb[0].mxu0
    %v741 = vpop.f32.mrb[0].mxu0
    %742 = vdwg.mxu0
    %v743 = vmul.f32 %v739, %v64
    %v744 = vtanh.pop %v743
    %v745 = vmul.f32 %v64, %v744
    %v746 = vadd.f32 %v745, %v65
    %v747 = vmul.f32 %v746, %v638
    %749 = vrot.lane.b32.xlu0 %v746, 64
    %v750 = vpop.permute.xlu0 %749
    %v752 = vmul.f32 %v746, %v750
    %754 = vrot.lane.b32.xlu0 %v752, 32
    %v755 = vpop.permute.xlu0 %754
    %v757 = vadd.f32 %v747, %v755
    %v758 = vtanh.pop %v757
    %760 = vrot.lane.b32.xlu0 %v758, 64
    %v761 = vpop.permute.xlu0 %760
    %v763 = vmul.f32 %v746, %v761
    %v764 = vmul.f32 %v763, %v405
    %766 = vrot.lane.b32.xlu0 %v764, 32
    %v767 = vpop.permute.xlu0 %766
    %v769 = vsel %vm412, %v767, 0.0
    %770 = vadd.xlane.f32.xlu0 %v769
    %v771 = vpop.xlane.xlu0 %770
    %v772 = vmax.f32 %v653, %v771
    %v773 = vsub.f32 %v653, %v772
    %v774 = vmul.f32 %v773, 1.442695
    %v775 = vpow.pop %v774
    %v776 = vsub.f32 %v771, %v772
    %v777 = vmul.f32 %v776, 1.442695
    %v778 = vpow.pop %v777
    %v779 = vmul.f32 %v775, %v661
    %v780 = vadd.f32 %v779, %v778
    %v781 = vmul.f32 %v775, %v664
    %v782 = vmul.f32 %v778, %v763
    %v783 = vadd.f32 %v781, %v782
    %v784 = vmul.f32 %v737, %v64
    %v785 = vtanh.pop %v784
    %v786 = vmul.f32 %v64, %v785
    %v787 = vadd.f32 %v786, %v65
    %v788 = vmul.f32 %v787, %v679
    %790 = vrot.lane.b32.xlu0 %v787, 64
    %v791 = vpop.permute.xlu0 %790
    %v793 = vmul.f32 %v787, %v791
    %795 = vrot.lane.b32.xlu0 %v793, 32
    %v796 = vpop.permute.xlu0 %795
    %v798 = vadd.f32 %v788, %v796
    %v799 = vtanh.pop %v798
    %801 = vrot.lane.b32.xlu0 %v799, 64
    %v802 = vpop.permute.xlu0 %801
    %v804 = vmul.f32 %v787, %v802
    %v805 = vrot.slane %v161, 5
    %v807 = vrot.slane %v162, 4
    %v809 = vsel %vm166, %v805, %v807
    %811 = vrot.lane.b32.xlu0 %v804, 64
    %v812 = vpop.permute.xlu0 %811
    %814 = vrot.lane.b32.xlu0 %v804, 96
    %v815 = vpop.permute.xlu0 %814
    %v817 = vsel %vm131, %v809, %v812
    %v818 = vsel %vm169, %v817, %v815
    %v819 = vsel %vm171, %v818, %v763
    %v820 = vpack.c.bf16 %v819, %v819
    %821 = vmatprep.subr.bf16.mxu0 %v234
    %822 = vmatpush1.bf16.msra.mxu0 %v233
    %823 = vmatprep.subr.bf16.mxu0 %v236
    %824 = vmatpush1.bf16.msra.mxu0 %v235
    %825 = vmatprep.subr.bf16.mxu0 %v238
    %826 = vmatpush1.bf16.msra.mxu0 %v237
    %827 = vmatprep.subr.bf16.mxu0 %v240
    %828 = vmatpush1.bf16.msra.mxu0 %v239
    %829 = vmatprep.subr.bf16.mxu0 %v242
    %830 = vmatpush1.bf16.msra.mxu0 %v241
    %831 = vmatprep.subr.bf16.mxu0 %v244
    %832 = vmatpush1.bf16.msra.mxu0 %v243
    %833 = vmatprep.subr.bf16.mxu0 %v246
    %834 = vmatpush1.bf16.msra.mxu0 %v245
    %835 = vmatprep.subr.bf16.mxu0 %v248
    %836 = vmatpush1.bf16.msra.mxu0 %v247
    %837 = vmatprep.subr.bf16.mxu0 0
    %838 = vmatpush1.bf16.msra.mxu0 0
    %839 = vmatprep.subr.bf16.mxu0 0
    %840 = vmatpush1.bf16.msra.mxu0 0
    %841 = vmatprep.subr.bf16.mxu0 0
    %842 = vmatpush1.bf16.msra.mxu0 0
    %843 = vmatprep.subr.bf16.mxu0 0
    %844 = vmatpush1.bf16.msra.mxu0 0
    %845 = vmatprep.subr.bf16.mxu0 0
    %846 = vmatpush1.bf16.msra.mxu0 0
    %847 = vmatprep.subr.bf16.mxu0 0
    %848 = vmatpush1.bf16.msra.mxu0 0
    %849 = vmatprep.subr.bf16.mxu0 0
    %850 = vmatpush1.bf16.msra.mxu0 0
    %851 = vmatprep.subr.bf16.mxu0 0
    %852 = vmatpush1.bf16.msra.mxu0 0
    %853 = vmatprep.mubr.bf16.mxu0 0
    %854 = vmatmul.mubr.bf16.gmra.mrb[0].mxu0 %v820
    %v855 = vpop.f32.mrb[0].mxu0
    %v856 = vadd.f32 %v178, %v855
    %v857 = vpop.f32.mrb[0].mxu0
    %v858 = vadd.f32 %v182, %v857
    %v859 = vpop.f32.mrb[0].mxu0
    %v860 = vpop.f32.mrb[0].mxu0
    %861 = vdwg.mxu0
    %v862 = vmul.f32 %v858, %v64
    %v863 = vtanh.pop %v862
    %v864 = vmul.f32 %v64, %v863
    %v865 = vadd.f32 %v864, %v65
    %v866 = vmul.f32 %v865, %v757
    %868 = vrot.lane.b32.xlu0 %v865, 64
    %v869 = vpop.permute.xlu0 %868
    %v871 = vmul.f32 %v865, %v869
    %873 = vrot.lane.b32.xlu0 %v871, 32
    %v874 = vpop.permute.xlu0 %873
    %v876 = vadd.f32 %v866, %v874
    %v877 = vtanh.pop %v876
    %879 = vrot.lane.b32.xlu0 %v877, 64
    %v880 = vpop.permute.xlu0 %879
    %v882 = vmul.f32 %v865, %v880
    %v883 = vmul.f32 %v882, %v405
    %885 = vrot.lane.b32.xlu0 %v883, 32
    %v886 = vpop.permute.xlu0 %885
    %v888 = vsel %vm412, %v886, 0.0
    %889 = vadd.xlane.f32.xlu0 %v888
    %v890 = vpop.xlane.xlu0 %889
    %v891 = vmax.f32 %v772, %v890
    %v892 = vsub.f32 %v772, %v891
    %v893 = vmul.f32 %v892, 1.442695
    %v894 = vpow.pop %v893
    %v895 = vsub.f32 %v890, %v891
    %v896 = vmul.f32 %v895, 1.442695
    %v897 = vpow.pop %v896
    %v898 = vmul.f32 %v894, %v780
    %v899 = vadd.f32 %v898, %v897
    %v900 = vmul.f32 %v894, %v783
    %v901 = vmul.f32 %v897, %v882
    %v902 = vadd.f32 %v900, %v901
    %v903 = vmul.f32 %v856, %v64
    %v904 = vtanh.pop %v903
    %v905 = vmul.f32 %v64, %v904
    %v906 = vadd.f32 %v905, %v65
    %v907 = vmul.f32 %v906, %v798
    %909 = vrot.lane.b32.xlu0 %v906, 64
    %v910 = vpop.permute.xlu0 %909
    %v912 = vmul.f32 %v906, %v910
    %914 = vrot.lane.b32.xlu0 %v912, 32
    %v915 = vpop.permute.xlu0 %914
    %v917 = vadd.f32 %v907, %v915
    %v918 = vtanh.pop %v917
    %920 = vrot.lane.b32.xlu0 %v918, 64
    %v921 = vpop.permute.xlu0 %920
    %v923 = vmul.f32 %v906, %v921
    %v924 = vrot.slane %v161, 6
    %v926 = vrot.slane %v162, 5
    %v928 = vsel %vm166, %v924, %v926
    %930 = vrot.lane.b32.xlu0 %v923, 64
    %v931 = vpop.permute.xlu0 %930
    %933 = vrot.lane.b32.xlu0 %v923, 96
    %v934 = vpop.permute.xlu0 %933
    %v936 = vsel %vm131, %v928, %v931
    %v937 = vsel %vm169, %v936, %v934
    %v938 = vsel %vm171, %v937, %v882
    %v939 = vpack.c.bf16 %v938, %v938
    %940 = vmatprep.subr.bf16.mxu0 %v234
    %941 = vmatpush1.bf16.msra.mxu0 %v233
    %942 = vmatprep.subr.bf16.mxu0 %v236
    %943 = vmatpush1.bf16.msra.mxu0 %v235
    %944 = vmatprep.subr.bf16.mxu0 %v238
    %945 = vmatpush1.bf16.msra.mxu0 %v237
    %946 = vmatprep.subr.bf16.mxu0 %v240
    %947 = vmatpush1.bf16.msra.mxu0 %v239
    %948 = vmatprep.subr.bf16.mxu0 %v242
    %949 = vmatpush1.bf16.msra.mxu0 %v241
    %950 = vmatprep.subr.bf16.mxu0 %v244
    %951 = vmatpush1.bf16.msra.mxu0 %v243
    %952 = vmatprep.subr.bf16.mxu0 %v246
    %953 = vmatpush1.bf16.msra.mxu0 %v245
    %954 = vmatprep.subr.bf16.mxu0 %v248
    %955 = vmatpush1.bf16.msra.mxu0 %v247
    %956 = vmatprep.subr.bf16.mxu0 0
    %957 = vmatpush1.bf16.msra.mxu0 0
    %958 = vmatprep.subr.bf16.mxu0 0
    %959 = vmatpush1.bf16.msra.mxu0 0
    %960 = vmatprep.subr.bf16.mxu0 0
    %961 = vmatpush1.bf16.msra.mxu0 0
    %962 = vmatprep.subr.bf16.mxu0 0
    %963 = vmatpush1.bf16.msra.mxu0 0
    %964 = vmatprep.subr.bf16.mxu0 0
    %965 = vmatpush1.bf16.msra.mxu0 0
    %966 = vmatprep.subr.bf16.mxu0 0
    %967 = vmatpush1.bf16.msra.mxu0 0
    %968 = vmatprep.subr.bf16.mxu0 0
    %969 = vmatpush1.bf16.msra.mxu0 0
    %970 = vmatprep.subr.bf16.mxu0 0
    %971 = vmatpush1.bf16.msra.mxu0 0
    %972 = vmatprep.mubr.bf16.mxu0 0
    %973 = vmatmul.mubr.bf16.gmra.mrb[0].mxu0 %v939
    %v974 = vpop.f32.mrb[0].mxu0
    %v975 = vadd.f32 %v178, %v974
    %v976 = vpop.f32.mrb[0].mxu0
    %v977 = vadd.f32 %v182, %v976
    %v978 = vpop.f32.mrb[0].mxu0
    %v979 = vpop.f32.mrb[0].mxu0
    %980 = vdwg.mxu0
    %v981 = vmul.f32 %v977, %v64
    %v982 = vtanh.pop %v981
    %v983 = vmul.f32 %v64, %v982
    %v984 = vadd.f32 %v983, %v65
    %v985 = vmul.f32 %v984, %v876
    %987 = vrot.lane.b32.xlu0 %v984, 64
    %v988 = vpop.permute.xlu0 %987
    %v990 = vmul.f32 %v984, %v988
    %992 = vrot.lane.b32.xlu0 %v990, 32
    %v993 = vpop.permute.xlu0 %992
    %v995 = vadd.f32 %v985, %v993
    %v996 = vtanh.pop %v995
    %998 = vrot.lane.b32.xlu0 %v996, 64
    %v999 = vpop.permute.xlu0 %998
    %v1001 = vmul.f32 %v984, %v999
    %v1002 = vmul.f32 %v1001, %v405
    %1004 = vrot.lane.b32.xlu0 %v1002, 32
    %v1005 = vpop.permute.xlu0 %1004
    %v1007 = vsel %vm412, %v1005, 0.0
    %1008 = vadd.xlane.f32.xlu0 %v1007
    %v1009 = vpop.xlane.xlu0 %1008
    %v1010 = vmax.f32 %v891, %v1009
    %v1011 = vsub.f32 %v891, %v1010
    %v1012 = vmul.f32 %v1011, 1.442695
    %v1013 = vpow.pop %v1012
    %v1014 = vsub.f32 %v1009, %v1010
    %v1015 = vmul.f32 %v1014, 1.442695
    %v1016 = vpow.pop %v1015
    %v1017 = vmul.f32 %v1013, %v899
    %v1018 = vadd.f32 %v1017, %v1016
    %v1019 = vmul.f32 %v1013, %v902
    %v1020 = vmul.f32 %v1016, %v1001
    %v1021 = vadd.f32 %v1019, %v1020
    %v1022 = vmul.f32 %v975, %v64
    %v1023 = vtanh.pop %v1022
    %v1024 = vmul.f32 %v64, %v1023
    %v1025 = vadd.f32 %v1024, %v65
    %v1026 = vmul.f32 %v1025, %v917
    %1028 = vrot.lane.b32.xlu0 %v1025, 64
    %v1029 = vpop.permute.xlu0 %1028
    %v1031 = vmul.f32 %v1025, %v1029
    %1033 = vrot.lane.b32.xlu0 %v1031, 32
    %v1034 = vpop.permute.xlu0 %1033
    %v1036 = vadd.f32 %v1026, %v1034
    %v1037 = vtanh.pop %v1036
    %1039 = vrot.lane.b32.xlu0 %v1037, 64
    %v1040 = vpop.permute.xlu0 %1039
    %v1042 = vmul.f32 %v1025, %v1040
    %v1043 = vrot.slane %v161, 7
    %v1045 = vrot.slane %v162, 6
    %v1047 = vsel %vm166, %v1043, %v1045
    %1049 = vrot.lane.b32.xlu0 %v1042, 64
    %v1050 = vpop.permute.xlu0 %1049
    %1052 = vrot.lane.b32.xlu0 %v1042, 96
    %v1053 = vpop.permute.xlu0 %1052
    %v1055 = vsel %vm131, %v1047, %v1050
    %v1056 = vsel %vm169, %v1055, %v1053
    %v1057 = vsel %vm171, %v1056, %v1001
    %v1058 = vpack.c.bf16 %v1057, %v1057
    %1059 = vmatprep.subr.bf16.mxu0 %v234
    %1060 = vmatpush1.bf16.msra.mxu0 %v233
    %1061 = vmatprep.subr.bf16.mxu0 %v236
    %1062 = vmatpush1.bf16.msra.mxu0 %v235
    %1063 = vmatprep.subr.bf16.mxu0 %v238
    %1064 = vmatpush1.bf16.msra.mxu0 %v237
    %1065 = vmatprep.subr.bf16.mxu0 %v240
    %1066 = vmatpush1.bf16.msra.mxu0 %v239
    %1067 = vmatprep.subr.bf16.mxu0 %v242
    %1068 = vmatpush1.bf16.msra.mxu0 %v241
    %1069 = vmatprep.subr.bf16.mxu0 %v244
    %1070 = vmatpush1.bf16.msra.mxu0 %v243
    %1071 = vmatprep.subr.bf16.mxu0 %v246
    %1072 = vmatpush1.bf16.msra.mxu0 %v245
    %1073 = vmatprep.subr.bf16.mxu0 %v248
    %1074 = vmatpush1.bf16.msra.mxu0 %v247
    %1075 = vmatprep.subr.bf16.mxu0 0
    %1076 = vmatpush1.bf16.msra.mxu0 0
    %1077 = vmatprep.subr.bf16.mxu0 0
    %1078 = vmatpush1.bf16.msra.mxu0 0
    %1079 = vmatprep.subr.bf16.mxu0 0
    %1080 = vmatpush1.bf16.msra.mxu0 0
    %1081 = vmatprep.subr.bf16.mxu0 0
    %1082 = vmatpush1.bf16.msra.mxu0 0
    %1083 = vmatprep.subr.bf16.mxu0 0
    %1084 = vmatpush1.bf16.msra.mxu0 0
    %1085 = vmatprep.subr.bf16.mxu0 0
    %1086 = vmatpush1.bf16.msra.mxu0 0
    %1087 = vmatprep.subr.bf16.mxu0 0
    %1088 = vmatpush1.bf16.msra.mxu0 0
    %1089 = vmatprep.subr.bf16.mxu0 0
    %1090 = vmatpush1.bf16.msra.mxu0 0
    %1091 = vmatprep.mubr.bf16.mxu0 0
    %1092 = vmatmul.mubr.bf16.gmra.mrb[0].mxu0 %v1058
    %v1093 = vpop.f32.mrb[0].mxu0
    %v1094 = vadd.f32 %v178, %v1093
    %v1095 = vpop.f32.mrb[0].mxu0
    %v1096 = vadd.f32 %v182, %v1095
    %v1097 = vpop.f32.mrb[0].mxu0
    %v1098 = vpop.f32.mrb[0].mxu0
    %1099 = vdwg.mxu0
    %v1100 = vmul.f32 %v1096, %v64
    %v1101 = vtanh.pop %v1100
    %v1102 = vmul.f32 %v64, %v1101
    %v1103 = vadd.f32 %v1102, %v65
    %v1104 = vmul.f32 %v1103, %v995
    %1106 = vrot.lane.b32.xlu0 %v1103, 64
    %v1107 = vpop.permute.xlu0 %1106
    %v1109 = vmul.f32 %v1103, %v1107
    %1111 = vrot.lane.b32.xlu0 %v1109, 32
    %v1112 = vpop.permute.xlu0 %1111
    %v1114 = vadd.f32 %v1104, %v1112
    %v1115 = vtanh.pop %v1114
    %1117 = vrot.lane.b32.xlu0 %v1115, 64
    %v1118 = vpop.permute.xlu0 %1117
    %v1120 = vmul.f32 %v1103, %v1118
    %v1121 = vmul.f32 %v1120, %v405
    %1123 = vrot.lane.b32.xlu0 %v1121, 32
    %v1124 = vpop.permute.xlu0 %1123
    %v1126 = vsel %vm412, %v1124, 0.0
    %1127 = vadd.xlane.f32.xlu0 %v1126
    %v1128 = vpop.xlane.xlu0 %1127
    %v1129 = vmax.f32 %v1010, %v1128
    %v1130 = vsub.f32 %v1010, %v1129
    %v1131 = vmul.f32 %v1130, 1.442695
    %v1132 = vpow.pop %v1131
    %v1133 = vsub.f32 %v1128, %v1129
    %v1134 = vmul.f32 %v1133, 1.442695
    %v1135 = vpow.pop %v1134
    %v1136 = vmul.f32 %v1132, %v1018
    %v1137 = vadd.f32 %v1136, %v1135
    %v1138 = vmul.f32 %v1132, %v1021
    %v1139 = vmul.f32 %v1135, %v1120
    %v1140 = vadd.f32 %v1138, %v1139
    %v1141 = vmul.f32 %v1094, %v64
    %v1142 = vtanh.pop %v1141
    %v1143 = vmul.f32 %v64, %v1142
    %v1144 = vadd.f32 %v1143, %v65
    %v1145 = vmul.f32 %v1144, %v1036
    %1147 = vrot.lane.b32.xlu0 %v1144, 64
    %v1148 = vpop.permute.xlu0 %1147
    %v1150 = vmul.f32 %v1144, %v1148
    %1152 = vrot.lane.b32.xlu0 %v1150, 32
    %v1153 = vpop.permute.xlu0 %1152
    %v1155 = vadd.f32 %v1145, %v1153
    %v1156 = vtanh.pop %v1155
    %1158 = vrot.lane.b32.xlu0 %v1156, 64
    %v1159 = vpop.permute.xlu0 %1158
    %v1161 = vmul.f32 %v1144, %v1159
    %1163 = vrot.lane.b32.xlu0 %v1161, 32
    %v1164 = vpop.permute.xlu0 %1163
    %1167 = vrot.lane.b32.xlu0 %v1120, 64
    %v1168 = vpop.permute.xlu0 %1167
    %v1170 = vsel %vm131, %v1164, %v1168
    %v1171 = vpack.c.bf16 %v1170, %v1170
    %v1180 = vunpack.c.l.b16 %v49
    %v1181 = vunpack.c.l.b16 %v50
    %v1182 = vunpack.c.l.b16 %v51
    %v1183 = vunpack.c.l.b16 %v52
    %v1184 = vunpack.c.l.b16 %v53
    %v1185 = vunpack.c.l.b16 %v54
    %v1186 = vunpack.c.l.b16 %v55
    %v1187 = vunpack.c.l.b16 %v56
    %v1188 = vpack.c.b16 %v1181, %v1180
    %v1189 = vpack.c.b16 %v1183, %v1182
    %v1190 = vpack.c.b16 %v1185, %v1184
    %v1191 = vpack.c.b16 %v1187, %v1186
    %v1197 = vsel %vm169, %v1171, 0
    %1199 = vmatprep.subr.bf16.mxu0 0
    %1200 = vmatpush1.bf16.msra.mxu0 %v1188
    %1201 = vmatprep.subr.bf16.mxu0 0
    %1202 = vmatpush1.bf16.msra.mxu0 %v1189
    %1203 = vmatprep.subr.bf16.mxu0 0
    %1204 = vmatpush1.bf16.msra.mxu0 %v1190
    %1205 = vmatprep.subr.bf16.mxu0 0
    %1206 = vmatpush1.bf16.msra.mxu0 %v1191
    %1207 = vmatprep.subr.bf16.mxu0 0
    %1208 = vmatpush1.bf16.msra.mxu0 0
    %1209 = vmatprep.subr.bf16.mxu0 0
    %1210 = vmatpush1.bf16.msra.mxu0 0
    %1211 = vmatprep.subr.bf16.mxu0 0
    %1212 = vmatpush1.bf16.msra.mxu0 0
    %1213 = vmatprep.subr.bf16.mxu0 0
    %1214 = vmatpush1.bf16.msra.mxu0 0
    %1215 = vmatprep.subr.bf16.mxu0 0
    %1216 = vmatpush1.bf16.msra.mxu0 0
    %1217 = vmatprep.subr.bf16.mxu0 0
    %1218 = vmatpush1.bf16.msra.mxu0 0
    %1219 = vmatprep.subr.bf16.mxu0 0
    %1220 = vmatpush1.bf16.msra.mxu0 0
    %1221 = vmatprep.subr.bf16.mxu0 0
    %1222 = vmatpush1.bf16.msra.mxu0 0
    %1223 = vmatprep.subr.bf16.mxu0 0
    %1224 = vmatpush1.bf16.msra.mxu0 0
    %1225 = vmatprep.subr.bf16.mxu0 0
    %1226 = vmatpush1.bf16.msra.mxu0 0
    %1227 = vmatprep.subr.bf16.mxu0 0
    %1228 = vmatpush1.bf16.msra.mxu0 0
    %1229 = vmatprep.subr.bf16.mxu0 0
    %1230 = vmatpush1.bf16.msra.mxu0 0
    %1231 = vmatprep.mubr.bf16.mxu0 0
    %1232 = vmatmul.mubr.bf16.gmra.mrb[0].mxu0 %v1197
    %v1233 = vpop.f32.mrb[0].mxu0
    %v1234 = vadd.f32 %v63, %v1233
    %v1235 = vpop.f32.mrb[0].mxu0
    %v1236 = vpop.f32.mrb[0].mxu0
    %v1237 = vpop.f32.mrb[0].mxu0
    %1238 = vdwg.mxu0
    %v1239 = vmul.f32 %v1234, %v64
    %v1240 = vtanh.pop %v1239
    %v1241 = vmul.f32 %v64, %v1240
    %v1242 = vadd.f32 %v1241, %v65
    %v1243 = vmul.f32 %v1242, %v1114
    %1245 = vrot.lane.b32.xlu0 %v1242, 64
    %v1246 = vpop.permute.xlu0 %1245
    %v1248 = vmul.f32 %v1242, %v1246
    %1250 = vrot.lane.b32.xlu0 %v1248, 32
    %v1251 = vpop.permute.xlu0 %1250
    %v1253 = vadd.f32 %v1243, %v1251
    %v1254 = vtanh.pop %v1253
    %1256 = vrot.lane.b32.xlu0 %v1254, 64
    %v1257 = vpop.permute.xlu0 %1256
    %v1259 = vmul.f32 %v1242, %v1257
    %v1260 = vmul.f32 %v1259, %v405
    %1262 = vrot.lane.b32.xlu0 %v1260, 32
    %v1263 = vpop.permute.xlu0 %1262
    %v1265 = vsel %vm412, %v1263, 0.0
    %1266 = vadd.xlane.f32.xlu0 %v1265
    %v1267 = vpop.xlane.xlu0 %1266
    %v1268 = vmax.f32 %v1129, %v1267
    %v1269 = vsub.f32 %v1129, %v1268
    %v1270 = vmul.f32 %v1269, 1.442695
    %v1271 = vpow.pop %v1270
    %v1272 = vsub.f32 %v1267, %v1268
    %v1273 = vmul.f32 %v1272, 1.442695
    %v1274 = vpow.pop %v1273
    %v1275 = vmul.f32 %v1271, %v1137
    %v1276 = vadd.f32 %v1275, %v1274
    %v1277 = vmul.f32 %v1271, %v1140
    %v1278 = vmul.f32 %v1274, %v1259
    %v1279 = vadd.f32 %v1277, %v1278
    %v1280 = vrcp.pop %v1276
    %v1281 = vmul.f32 %v1279, %v1280
    %v1282 = vadd.f32 %v1281, %v1259
    %v1283 = vpack.c.bf16 %v1282, %v1282
    %1285 = vrot.lane.b32.xlu0 %v1283, 32
    %v1286 = vpop.permute.xlu0 %1285
    %v1290 = vunpack.c.l.b16 %v59
    %v1291 = vunpack.c.l.b16 %v60
    %v1292 = vunpack.c.l.b16 %v61
    %v1293 = vpack.c.b16 %v1290, %v79
    %v1294 = vpack.c.b16 %v1292, %v1291
    %1295 = vrot.lane.b32.xlu0 %v1293, 96
    %v1296 = vpop.permute.xlu0 %1295
    %1297 = vrot.lane.b32.xlu0 %v1294, 96
    %v1298 = vpop.permute.xlu0 %1297
    %v1302 = vsel %vm131, %v1286, 0
    %1304 = vmatprep.subr.bf16.mxu0 0
    %1305 = vmatpush1.bf16.msra.mxu0 %v1296
    %1306 = vmatprep.subr.bf16.mxu0 0
    %1307 = vmatpush1.bf16.msra.mxu0 %v1298
    %1308 = vmatprep.subr.bf16.mxu0 0
    %1309 = vmatpush1.bf16.msra.mxu0 0
    %1310 = vmatprep.subr.bf16.mxu0 0
    %1311 = vmatpush1.bf16.msra.mxu0 0
    %1312 = vmatprep.subr.bf16.mxu0 0
    %1313 = vmatpush1.bf16.msra.mxu0 0
    %1314 = vmatprep.subr.bf16.mxu0 0
    %1315 = vmatpush1.bf16.msra.mxu0 0
    %1316 = vmatprep.subr.bf16.mxu0 0
    %1317 = vmatpush1.bf16.msra.mxu0 0
    %1318 = vmatprep.subr.bf16.mxu0 0
    %1319 = vmatpush1.bf16.msra.mxu0 0
    %1320 = vmatprep.subr.bf16.mxu0 0
    %1321 = vmatpush1.bf16.msra.mxu0 0
    %1322 = vmatprep.subr.bf16.mxu0 0
    %1323 = vmatpush1.bf16.msra.mxu0 0
    %1324 = vmatprep.subr.bf16.mxu0 0
    %1325 = vmatpush1.bf16.msra.mxu0 0
    %1326 = vmatprep.subr.bf16.mxu0 0
    %1327 = vmatpush1.bf16.msra.mxu0 0
    %1328 = vmatprep.subr.bf16.mxu0 0
    %1329 = vmatpush1.bf16.msra.mxu0 0
    %1330 = vmatprep.subr.bf16.mxu0 0
    %1331 = vmatpush1.bf16.msra.mxu0 0
    %1332 = vmatprep.subr.bf16.mxu0 0
    %1333 = vmatpush1.bf16.msra.mxu0 0
    %1334 = vmatprep.subr.bf16.mxu0 0
    %1335 = vmatpush1.bf16.msra.mxu0 0
    %1336 = vmatprep.mubr.bf16.mxu0 0
    %1337 = vmatmul.mubr.bf16.gmra.mrb[0].mxu0 %v1302
    %v1338 = vpop.f32.mrb[0].mxu0
    %v1339 = vadd.f32 %v70, %v1338
    %v1340 = vpop.f32.mrb[0].mxu0
    %v1341 = vpop.f32.mrb[0].mxu0
    %v1342 = vpop.f32.mrb[0].mxu0
    %1343 = vdwg.mxu0
    %v1344 = vsel %vm412, %v1339, 0.0
    %1345 = vadd.xlane.f32.xlu0 %v1344
    %v1346 = vpop.xlane.xlu0 %1345
    %v1347 = vmul.f32 %v1346, %v138
    %v1348 = vsub.f32 %v1339, %v1347
    %v1349 = vmul.f32 %v1348, %v1348
    %v1350 = vsel %vm412, %v1349, 0.0
    %1351 = vadd.xlane.f32.xlu0 %v1350
    %v1352 = vpop.xlane.xlu0 %1351
    %v1353 = vmul.f32 %v1352, %v138
    %v1354 = vadd.f32 %v1353, 1e-05
    %v1355 = vrsqrt.pop %v1354
    %v1356 = vmul.f32 %v1348, %v1355
    %v1357 = vmul.f32 %v1356, %v71
    %v1358 = vadd.f32 %v1357, %v72
    %v1359 = vmul.f32 %v1358, 0.5
    %v1360 = vmul.f32 %v1358, 0.70710677
    %vm1361 = vcmp.ge.f32.partialorder %v1360, 0.0
    %v1362 = vsel %vm1361, 1.0, -1.0
    %v1363 = vand.u32 2147483647, %v1360
    %v1364 = vmul.f32 %v1363, 0.3275911
    %v1365 = vadd.f32 %v1364, 1.0
    %v1366 = vrcp.pop %v1365
    %v1367 = vmul.f32 1.0, %v1366
    %v1368 = vmul.f32 %v1367, 1.0614054
    %v1369 = vadd.f32 %v1368, -1.4531521
    %v1370 = vmul.f32 %v1369, %v1367
    %v1371 = vadd.f32 %v1370, 1.4214138
    %v1372 = vmul.f32 %v1371, %v1367
    %v1373 = vadd.f32 %v1372, -0.28449672
    %v1374 = vmul.f32 %v1373, %v1367
    %v1375 = vadd.f32 %v1374, 0.2548296
    %v1376 = vmul.f32 %v1375, %v1367
    %v1377 = vsub.f32 0.0, %v1363
    %v1378 = vmul.f32 %v1377, %v1363
    %v1379 = vmul.f32 %v1378, 1.442695
    %v1380 = vpow.pop %v1379
    %v1381 = vmul.f32 %v1376, %v1380
    %v1382 = vsub.f32 1.0, %v1381
    %v1383 = vmul.f32 %v1362, %v1382
    %v1384 = vadd.f32 %v1383, 1.0
    %v1385 = vmul.f32 %v1359, %v1384
    %v1386 = vpack.c.bf16 %v1385, %v1385
    %1387 = vrot.lane.b32.xlu0 %v1293, 64
    %v1388 = vpop.permute.xlu0 %1387
    %1389 = vrot.lane.b32.xlu0 %v1294, 64
    %v1390 = vpop.permute.xlu0 %1389
    %v1394 = vsel %vm131, %v1386, 0
    %1396 = vmatprep.subr.bf16.mxu0 0
    %1397 = vmatpush1.bf16.msra.mxu0 %v1388
    %1398 = vmatprep.subr.bf16.mxu0 0
    %1399 = vmatpush1.bf16.msra.mxu0 %v1390
    %1400 = vmatprep.subr.bf16.mxu0 0
    %1401 = vmatpush1.bf16.msra.mxu0 0
    %1402 = vmatprep.subr.bf16.mxu0 0
    %1403 = vmatpush1.bf16.msra.mxu0 0
    %1404 = vmatprep.subr.bf16.mxu0 0
    %1405 = vmatpush1.bf16.msra.mxu0 0
    %1406 = vmatprep.subr.bf16.mxu0 0
    %1407 = vmatpush1.bf16.msra.mxu0 0
    %1408 = vmatprep.subr.bf16.mxu0 0
    %1409 = vmatpush1.bf16.msra.mxu0 0
    %1410 = vmatprep.subr.bf16.mxu0 0
    %1411 = vmatpush1.bf16.msra.mxu0 0
    %1412 = vmatprep.subr.bf16.mxu0 0
    %1413 = vmatpush1.bf16.msra.mxu0 0
    %1414 = vmatprep.subr.bf16.mxu0 0
    %1415 = vmatpush1.bf16.msra.mxu0 0
    %1416 = vmatprep.subr.bf16.mxu0 0
    %1417 = vmatpush1.bf16.msra.mxu0 0
    %1418 = vmatprep.subr.bf16.mxu0 0
    %1419 = vmatpush1.bf16.msra.mxu0 0
    %1420 = vmatprep.subr.bf16.mxu0 0
    %1421 = vmatpush1.bf16.msra.mxu0 0
    %1422 = vmatprep.subr.bf16.mxu0 0
    %1423 = vmatpush1.bf16.msra.mxu0 0
    %1424 = vmatprep.subr.bf16.mxu0 0
    %1425 = vmatpush1.bf16.msra.mxu0 0
    %1426 = vmatprep.subr.bf16.mxu0 0
    %1427 = vmatpush1.bf16.msra.mxu0 0
    %1428 = vmatprep.mubr.bf16.mxu0 0
    %1429 = vmatmul.mubr.bf16.gmra.mrb[0].mxu0 %v1394
    %v1430 = vpop.f32.mrb[0].mxu0
    %v1431 = vadd.f32 %v73, %v1430
    %v1432 = vpop.f32.mrb[0].mxu0
    %v1433 = vpop.f32.mrb[0].mxu0
    %v1434 = vpop.f32.mrb[0].mxu0
    %1435 = vdwg.mxu0
    %vm1436 = vcmask 123904
    %1437 = vst.msk [vmem:[#allocation5] sm:$0x3] %vm1436, %v1431
    %1439 = vrot.lane.b32.xlu0 %v1431, 112
    %v1440 = vpop.permute.xlu0 %1439
    %1442 = vst.msk [vmem:[#allocation6] sm:$0x3] %vm1436, %v1440
    // Predicated region
    $region18: #{lightweight_encoder_lstm.1} parent=1 // pred_check
      _
    $region19: #{lightweight_encoder_lstm.1} parent=1 // pred_check_branch
      %1444 = sbr.rel (0) target = $region21
    $region20: #{lightweight_encoder_lstm.1} parent=1 // pred_region
      %s1446 = ssub.s32 32, 32
      %1447 = vsyncadd [#allocation4], %s1446
      %s1449 = sshll.u32 [#allocation5], 4
      %s1450 = int_to_ptr.vmem [resolvable:$true] %s1449
      %1452 = dma.vmem_to_hbm [thread:$0]  %s1450, 32, %s3, [#allocation4]
    $region21: #{lightweight_encoder_lstm.1} parent=1 // pred_fallthru
      _
    // Predicated region
    $region22: #{lightweight_encoder_lstm.1} parent=1 // pred_check
      _
    $region23: #{lightweight_encoder_lstm.1} parent=1 // pred_check_branch
      %1454 = sbr.rel (0) target = $region25
    $region24: #{lightweight_encoder_lstm.1} parent=1 // pred_region
      %s1456 = ssub.s32 32, 32
      %1457 = vsyncadd [#allocation7], %s1456
      %s1459 = sshll.u32 [#allocation6], 4
      %s1460 = int_to_ptr.vmem [resolvable:$true] %s1459
      %1462 = dma.vmem_to_hbm [thread:$0]  %s1460, 32, %s4, [#allocation7]
    $region25: #{lightweight_encoder_lstm.1} parent=1 // pred_fallthru
      _
    // Predicated region
    $region26: #{lightweight_encoder_lstm.1} parent=1 // pred_check
      _
    $region27: #{lightweight_encoder_lstm.1} parent=1 // pred_check_branch
      %1464 = sbr.rel (0) target = $region29
    $region28: #{lightweight_encoder_lstm.1} parent=1 // pred_region
      %1465 = dma.done [#allocation4], 32
    $region29: #{lightweight_encoder_lstm.1} parent=1 // pred_fallthru
      _
    // Predicated region
    $region30: #{lightweight_encoder_lstm.1} parent=1 // pred_check
      _
    $region31: #{lightweight_encoder_lstm.1} parent=1 // pred_check_branch
      %1467 = sbr.rel (0) target = $region33
    $region32: #{lightweight_encoder_lstm.1} parent=1 // pred_region
      %1468 = dma.done [#allocation7], 32
    $region33: #{lightweight_encoder_lstm.1} parent=1 // pred_fallthru
      _
    %1469 = vsyncpa [#allocation3], 1
    %1470 = vsyncpa [#allocation4], 1
    %1471 = vsyncpa [#allocation7], 1

</llo_original>
